<compile_context>
chip_gen: v6e
topology: v6e:2x2x1
jax: 0.10.0
libtpu: 0.0.40
codegen_flags: <defaults>
</compile_context>

<pallas_src>
import math

import jax
import jax.numpy as jnp
from jax.experimental import pallas as pl
from jax.experimental.pallas import tpu as pltpu

# ---- exact (erf-based) GELU via Abramowitz-Stegun 7.1.26 --------------------
_A1, _A2, _A3, _A4, _A5 = (0.254829592, -0.284496736, 1.421413741,
                           -1.453152027, 1.061405429)
_P = 0.3275911
_SQRT2 = 1.4142135623730951


def _erf_approx(z):
    # TODO(synk): torch GELU uses exact erf; Mosaic has no erf primitive, so we
    # use the A&S 7.1.26 rational approximation (max abs error ~1.5e-7).  The
    # divide here stays exact: it feeds a 5th-order polynomial, so an approx
    # reciprocal would amplify error for zero measurable gain.
    sign = jnp.where(z >= 0.0, 1.0, -1.0).astype(z.dtype)
    az = jnp.abs(z)
    t = 1.0 / (1.0 + _P * az)
    poly = ((((_A5 * t + _A4) * t + _A3) * t + _A2) * t + _A1) * t
    return sign * (1.0 - poly * jnp.exp(-az * az))


def _gelu(z):
    return 0.5 * z * (1.0 + _erf_approx(z / _SQRT2))


# ------------------------------ Pallas kernel --------------------------------
def _lmda_kernel(xcol_ref, wd_ref, sm12_ref, c12_ref, selsum_ref, aband_ref,
                 ab_ref, selexp_ref, w3_ref, wcexp_ref, s34_ref, c34_ref,
                 poolt_ref, wlexp_ref, selbt_ref, gn_ref, bl_ref,
                 logits_ref, bs_ref):
    f32 = jnp.float32

    # -- time_conv: im2col slab -> one MXU matmul (replaces the 600-step
    #    shift-MAC); 1x1 conv + BN1 + BN2 folded into sm12 / c12.
    xc = xcol_ref[0]                                                 # (K, Lbig)
    g = jnp.dot(wd_ref[...], xc, preferred_element_type=f32)         # (D1, Lbig)
    t2 = _gelu(sm12_ref[...] * g + c12_ref[...])                     # (D1, Lbig)

    # -- EEGDepthAttention: mean over electrodes via a 0/1 selection matmul
    #    (the 1/C is folded into the banded conv matrix); the (k,1) depth conv
    #    is a banded (D1, D1) matmul; softmax over the depth (sublane) axis.
    xs = jnp.dot(t2, selsum_ref[...], preferred_element_type=f32)    # (D1, Lsml)
    y = jnp.dot(aband_ref[...], xs, preferred_element_type=f32) + ab_ref[...]
    y = y - jnp.max(y, axis=0, keepdims=True)
    ye = jnp.exp(y)
    attn = ye * pl.reciprocal(jnp.sum(ye, axis=0, keepdims=True), approx=True)
    # broadcast attn (and its *C factor) back over electrodes with one matmul
    att_e = jnp.dot(attn, selexp_ref[...], preferred_element_type=f32)

    # -- chanel_conv: 1x1 conv as one dot over the stacked slab; the depthwise
    #    (C,1) conv + BN3 fold into a wc-weighted lane reduction (one matmul).
    p = jnp.dot(w3_ref[...], att_e * t2, preferred_element_type=f32)  # (D2, Lbig)
    q = jnp.dot(wcexp_ref[...] * p, selsum_ref[...],
                preferred_element_type=f32)                           # (D2, Lsml)
    c2 = _gelu(s34_ref[...] * q + c34_ref[...])                       # (D2, Lsml)

    # -- norm: AvgPool3d((1,1,avepool)) as one matmul; Dropout = identity.
    pooled = jnp.dot(c2, poolt_ref[...], preferred_element_type=f32)  # (D2, Bt*T)
    bs_ref[0, :, :] = pooled

    # -- classifier (batch stays on lanes): expanded-weight mask + two small
    #    matmuls instead of T single-column dots, then softmax over classes.
    nc = gn_ref.shape[0]
    ptile = jnp.tile(pooled, (nc, 1))                                 # (NC*D2, Bt*T)
    z = jnp.dot(wlexp_ref[...] * ptile, selbt_ref[...],
                preferred_element_type=f32)                           # (NC*D2, Bt)
    lp = jnp.dot(gn_ref[...], z, preferred_element_type=f32) + bl_ref[...]
    lp = lp - jnp.max(lp, axis=0, keepdims=True)
    le = jnp.exp(lp)
    probs = le * pl.reciprocal(jnp.sum(le, axis=0, keepdims=True), approx=True)
    logits_ref[0, :, :] = probs                                       # (NC, Bt)


# ------------------------ wrapper-side weight folding -------------------------
def _prepare_kernel_constants(params, *, Bt, C, W, avepool):
    """Fold BatchNorms / 1x1 convs into the depthwise weights and build the
    small structural (selection / pooling / banded-conv) matrices that let the
    kernel express every reduction as a lane-stable MXU matmul.  Everything
    here is weight-sized (KB scale) and computed once per call."""
    (cw, w1, s1, b1, wd, s2, b2, ak, ab, w3, s3, b3, wc, s4, b4, wl, bl) = params
    D1, K = wd.shape
    D2 = w3.shape[0]
    NC = wl.shape[0]
    Wp = W - K + 1
    T = Wp // avepool
    Lbig = Bt * C * Wp
    Lsml = Bt * Wp
    f32 = jnp.float32

    # 1x1 conv + BN1 + BN2 folded: t2 = GELU(sm12 * (wd @ im2col) + c12)
    m = jnp.dot(w1, cw)                                       # (D1, C)
    sm12 = (s2 * s1) * m
    sm12 = jnp.broadcast_to(sm12[:, None, :, None],
                            (D1, Bt, C, Wp)).reshape(D1, Lbig)
    c12 = s2 * (b1 * jnp.sum(wd, axis=1, keepdims=True)) + b2  # (D1, 1)

    # 0/1 selection matrix: (b, c, w') lanes -> (b, w') lanes (sum over c)
    sel = (jnp.eye(Bt, dtype=f32)[:, None, None, :, None] *
           jnp.eye(Wp, dtype=f32)[None, None, :, None, :])
    sel = jnp.broadcast_to(sel, (Bt, C, Wp, Bt, Wp)).reshape(Lbig, Lsml)
    # transposed expansion, with the attention "* C" folded in
    sel_exp = sel.T * float(C)                                 # (Lsml, Lbig)

    # (k,1) depth-attention conv as a banded (D1, D1) matrix; the 1/C of the
    # adaptive average pool over electrodes is folded in here.
    k_att = ak.shape[1]
    pad = k_att // 2
    didx = jnp.arange(D1)
    joff = didx[None, :] - didx[:, None] + pad
    valid = (joff >= 0) & (joff < k_att)
    aband = (jnp.where(valid, ak[0, jnp.clip(joff, 0, k_att - 1)], 0.0)
             .astype(f32) / float(C))                          # (D1, D1)
    ab2 = jnp.reshape(ab, (1, 1)).astype(f32)

    # chanel_conv: wc broadcast over (b, w') lanes; BN3/BN4 folded exactly.
    wcexp = jnp.broadcast_to(wc[:, None, :, None],
                             (D2, Bt, C, Wp)).reshape(D2, Lbig)
    s34 = s4 * s3                                              # (D2, 1)
    c34 = s4 * (b3 * jnp.sum(wc, axis=1, keepdims=True)) + b4  # (D2, 1)

    # average pool over time as a (Bt*Wp, Bt*T) matrix (truncating remainder).
    wgrid = jnp.arange(Wp)
    pool_w = jnp.where((wgrid[:, None] // avepool == jnp.arange(T)[None, :]) &
                       (wgrid[:, None] < T * avepool),
                       1.0 / avepool, 0.0).astype(f32)         # (Wp, T)
    poolt = (jnp.eye(Bt, dtype=f32)[:, None, :, None] *
             pool_w[None, :, None, :]).reshape(Lsml, Bt * T)

    # classifier: expanded weight mask + batch selector + class-group summer.
    wl3 = wl.reshape(NC, D2, T)
    wlexp = jnp.broadcast_to(wl3[:, :, None, :],
                             (NC, D2, Bt, T)).reshape(NC * D2, Bt * T)
    selbt = jnp.broadcast_to(jnp.eye(Bt, dtype=f32)[:, None, :],
                             (Bt, T, Bt)).reshape(Bt * T, Bt)
    gn = jnp.broadcast_to(jnp.eye(NC, dtype=f32)[:, :, None],
                          (NC, NC, D2)).reshape(NC, NC * D2)
    bl2 = bl.reshape(NC, 1)

    # NOTE: operands kept in f32 (no bf16 MXU cast) to preserve the 1e-3-level
    # agreement with the exact reference.
    return (wd, sm12, c12, sel, aband, ab2, sel_exp, w3, wcexp, s34, c34,
            poolt, wlexp, selbt, gn, bl2)


# ---------------------------------- wrapper -----------------------------------
def lmda_forward(x, params, *, avepool, batch_block=None):
    (cw, w1, s1, b1, wd, s2, b2, ak, ab, w3, s3, b3, wc, s4, b4, wl, bl) = params
    B, C, W = x.shape
    D1, K = wd.shape
    D2 = w3.shape[0]
    NC = wl.shape[0]
    Wp = W - K + 1
    T = Wp // avepool

    # Batch block per grid step.  Default: whole batch in one step (maximizes
    # lane width for small B); set batch_block < B to shard the batch grid
    # axis across TensorCores (v7x) for large batches.
    Bt = B if batch_block is None else batch_block
    assert B % Bt == 0, "batch must be divisible by batch_block"
    nb = B // Bt
    Lbig = Bt * C * Wp

    # im2col in the wrapper: XcolT[blk, k, (b, c, w')] = x[blk*Bt + b, c, w'+k]
    idx = jnp.arange(Wp)[:, None] + jnp.arange(K)[None, :]       # (Wp, K)
    patches = x[:, :, idx]                                       # (B, C, Wp, K)
    xcolT = jnp.transpose(patches, (3, 0, 1, 2))                 # (K, B, C, Wp)
    xcolT = xcolT.reshape(K, nb, Bt, C, Wp)
    xcolT = jnp.transpose(xcolT, (1, 0, 2, 3, 4)).reshape(nb, K, Lbig)

    consts = _prepare_kernel_constants(params, Bt=Bt, C=C, W=W, avepool=avepool)
    kernel_inputs = (xcolT,) + consts

    in_specs = [pl.BlockSpec((1, K, Lbig), lambda i: (i, 0, 0))]
    for a in consts:
        nd = a.ndim
        # constant-index specs: weights stay resident, not re-DMAed per step
        in_specs.append(pl.BlockSpec(a.shape, lambda i, _nd=nd: (0,) * _nd))
    out_specs = (pl.BlockSpec((1, NC, Bt), lambda i: (i, 0, 0)),
                 pl.BlockSpec((1, D2, Bt * T), lambda i: (i, 0, 0)))
    out_shape = (jax.ShapeDtypeStruct((nb, NC, Bt), jnp.float32),
                 jax.ShapeDtypeStruct((nb, D2, Bt * T), jnp.float32))

    logits_blk, bs_blk = pl.pallas_call(
        _lmda_kernel,
        grid=(nb,),
        in_specs=in_specs,
        out_specs=out_specs,
        out_shape=out_shape,
        compiler_params=pltpu.CompilerParams(
            dimension_semantics=("parallel",)),
    )(*kernel_inputs)

    logits = jnp.transpose(logits_blk, (0, 2, 1)).reshape(B, NC)
    bs = bs_blk.reshape(nb, D2, Bt, T)
    brain_state = jnp.transpose(bs, (0, 2, 1, 3)).reshape(B, D2, T)[:, :, None, :]
    return logits, brain_state


# ----------------------- deterministic parameter init -------------------------
def init_params(key, cfg):
    C, W = cfg["node_size"], cfg["time_series_size"]
    NC = cfg["num_classes"]
    depth, D1, D2 = cfg["depth"], cfg["channel_depth1"], cfg["channel_depth2"]
    ap, K = cfg["avepool"], 75
    Wp = W - K + 1
    T = Wp // ap
    hidden = D2 * T
    keys = jax.random.split(key, 7)

    def xavier(k, shape, fan_in, fan_out):
        bound = math.sqrt(6.0 / (fan_in + fan_out))
        return jax.random.uniform(k, shape, jnp.float32, -bound, bound)

    def bn_fold(n, eps=1e-5):
        gamma = jnp.ones((n, 1), jnp.float32)
        beta = jnp.zeros((n, 1), jnp.float32)
        mean = jnp.zeros((n, 1), jnp.float32)
        var = jnp.ones((n, 1), jnp.float32)
        scale = gamma / jnp.sqrt(var + eps)
        return scale, beta - mean * scale

    cw = xavier(keys[0], (depth, C), C, depth * C)     # channel_weight
    w1 = xavier(keys[1], (D1, depth), depth, D1)       # time_conv 1x1
    wd = xavier(keys[2], (D1, K), K, D1 * K)           # depthwise (1,75)
    ak = xavier(keys[3], (1, 7), 7, 7)                 # attention (7,1) conv
    ab = jnp.zeros((), jnp.float32)
    w3 = xavier(keys[4], (D2, D1), D1, D2)             # chanel_conv 1x1
    wc = xavier(keys[5], (D2, C), C, D2 * C)           # depthwise (C,1)
    wl = xavier(keys[6], (NC, hidden), hidden, NC)     # classifier
    bl = jnp.zeros((NC,), jnp.float32)
    s1, b1 = bn_fold(D1)
    s2, b2 = bn_fold(D1)
    s3, b3 = bn_fold(D2)
    s4, b4 = bn_fold(D2)
    return (cw, w1, s1, b1, wd, s2, b2, ak, ab, w3, s3, b3, wc, s4, b4, wl, bl)


# --------------------------- plain-JAX reference ------------------------------
def lmda_reference(x, params, *, avepool):
    (cw, w1, s1, b1, wd, s2, b2, ak, ab, w3, s3, b3, wc, s4, b4, wl, bl) = params
    B, C, W = x.shape
    D1, K = wd.shape
    D2 = w3.shape[0]
    Wp = W - K + 1
    T = Wp // avepool

    z = x[:, None, :, :] * cw[None, :, :, None]                  # bdcw,hdc einsum
    t1 = jnp.einsum('od,bdcw->bocw', w1, z)
    t1 = t1 * s1.reshape(1, D1, 1, 1) + b1.reshape(1, D1, 1, 1)
    t2 = jnp.zeros((B, D1, C, Wp), jnp.float32)
    for k in range(K):
        t2 = t2 + t1[..., k:k + Wp] * wd[:, k].reshape(1, D1, 1, 1)
    t2 = t2 * s2.reshape(1, D1, 1, 1) + b2.reshape(1, D1, 1, 1)
    t2 = jax.nn.gelu(t2, approximate=False)

    xp = jnp.mean(t2, axis=2)
    pad = ak.shape[1] // 2
    xpp = jnp.pad(xp, ((0, 0), (pad, pad), (0, 0)))
    y = jnp.zeros((B, D1, Wp), jnp.float32)
    for j in range(ak.shape[1]):
        y = y + ak[0, j] * xpp[:, j:j + D1, :]
    y = y + ab
    attn = jax.nn.softmax(y, axis=1)
    att_out = attn[:, :, None, :] * C * t2

    c1 = jnp.einsum('po,bocw->bpcw', w3, att_out)
    c1 = c1 * s3.reshape(1, D2, 1, 1) + b3.reshape(1, D2, 1, 1)
    c2 = jnp.sum(c1 * wc.reshape(1, D2, C, 1), axis=2)
    c2 = c2 * s4.reshape(1, D2, 1) + b4.reshape(1, D2, 1)
    c2 = jax.nn.gelu(c2, approximate=False)

    pooled = c2[:, :, :T * avepool].reshape(B, D2, T, avepool).mean(-1)
    feats = pooled.reshape(B, D2 * T)
    logits = jax.nn.softmax(feats @ wl.T + bl[None, :], axis=1)
    return logits, pooled[:, :, None, :]


# ------------------------------------ main ------------------------------------
if __name__ == "__main__":
    cfg = dict(node_size=8, time_series_size=85, num_classes=4,
               depth=9, channel_depth1=24, channel_depth2=9, avepool=5)
    B = 2
    key = jax.random.PRNGKey(0)
    kx, kp = jax.random.split(key)
    x = jax.random.normal(kx, (B, cfg["node_size"], cfg["time_series_size"]),
                          jnp.float32)
    params = init_params(kp, cfg)

    logits, brain_state = lmda_forward(x, params, avepool=cfg["avepool"])
    logits = jax.block_until_ready(logits)
    brain_state = jax.block_until_ready(brain_state)

    T_out = (cfg["time_series_size"] - 75 + 1) // cfg["avepool"]
    assert logits.shape == (B, cfg["num_classes"])
    assert brain_state.shape == (B, cfg["channel_depth2"], 1, T_out)

    ref_logits, ref_bs = lmda_reference(x, params, avepool=cfg["avepool"])
    # Tolerances allow for the A&S erf approximation and the approx (EUP)
    # reciprocals used in the two softmax denominators.
    assert jnp.allclose(logits, ref_logits, atol=2e-4, rtol=2e-3), \
        (logits, ref_logits)
    assert jnp.allclose(brain_state, ref_bs, atol=2e-4, rtol=2e-3)

    print("KERNEL_OK")
</pallas_src>

<mosaic_0001>
module attributes {stable_mosaic.version = 11 : i64} {
  func.func @_lmda_kernel(%arg0: i32, %arg1: memref<1x75x176xf32, #tpu.memory_space<vmem>>, %arg2: memref<24x75xf32, #tpu.memory_space<vmem>>, %arg3: memref<24x176xf32, #tpu.memory_space<vmem>>, %arg4: memref<24x1xf32, #tpu.memory_space<vmem>>, %arg5: memref<176x22xf32, #tpu.memory_space<vmem>>, %arg6: memref<24x24xf32, #tpu.memory_space<vmem>>, %arg7: memref<1x1xf32, #tpu.memory_space<vmem>>, %arg8: memref<22x176xf32, #tpu.memory_space<vmem>>, %arg9: memref<9x24xf32, #tpu.memory_space<vmem>>, %arg10: memref<9x176xf32, #tpu.memory_space<vmem>>, %arg11: memref<9x1xf32, #tpu.memory_space<vmem>>, %arg12: memref<9x1xf32, #tpu.memory_space<vmem>>, %arg13: memref<22x4xf32, #tpu.memory_space<vmem>>, %arg14: memref<36x4xf32, #tpu.memory_space<vmem>>, %arg15: memref<4x2xf32, #tpu.memory_space<vmem>>, %arg16: memref<4x36xf32, #tpu.memory_space<vmem>>, %arg17: memref<4x1xf32, #tpu.memory_space<vmem>>, %arg18: memref<1x4x2xf32, #tpu.memory_space<vmem>>, %arg19: memref<1x9x4xf32, #tpu.memory_space<vmem>>) attributes {dimension_semantics = [#tpu.dimension_semantics<parallel>], iteration_bounds = array<i64: 1>, scalar_prefetch = 0 : i64, scratch_operands = 0 : i64, tpu.core_type = #tpu.core_type<tc>, window_params = [{transform_indices = @transform_0, window_bounds = array<i64: 1, 75, 176>}, {pipeline_mode = #tpu.pipeline_mode<synchronous>, transform_indices = @transform_1, window_bounds = array<i64: 24, 75>}, {pipeline_mode = #tpu.pipeline_mode<synchronous>, transform_indices = @transform_2, window_bounds = array<i64: 24, 176>}, {pipeline_mode = #tpu.pipeline_mode<synchronous>, transform_indices = @transform_3, window_bounds = array<i64: 24, 1>}, {pipeline_mode = #tpu.pipeline_mode<synchronous>, transform_indices = @transform_4, window_bounds = array<i64: 176, 22>}, {pipeline_mode = #tpu.pipeline_mode<synchronous>, transform_indices = @transform_5, window_bounds = array<i64: 24, 24>}, {pipeline_mode = #tpu.pipeline_mode<synchronous>, transform_indices = @transform_6, window_bounds = array<i64: 1, 1>}, {pipeline_mode = #tpu.pipeline_mode<synchronous>, transform_indices = @transform_7, window_bounds = array<i64: 22, 176>}, {pipeline_mode = #tpu.pipeline_mode<synchronous>, transform_indices = @transform_8, window_bounds = array<i64: 9, 24>}, {pipeline_mode = #tpu.pipeline_mode<synchronous>, transform_indices = @transform_9, window_bounds = array<i64: 9, 176>}, {pipeline_mode = #tpu.pipeline_mode<synchronous>, transform_indices = @transform_10, window_bounds = array<i64: 9, 1>}, {pipeline_mode = #tpu.pipeline_mode<synchronous>, transform_indices = @transform_11, window_bounds = array<i64: 9, 1>}, {pipeline_mode = #tpu.pipeline_mode<synchronous>, transform_indices = @transform_12, window_bounds = array<i64: 22, 4>}, {pipeline_mode = #tpu.pipeline_mode<synchronous>, transform_indices = @transform_13, window_bounds = array<i64: 36, 4>}, {pipeline_mode = #tpu.pipeline_mode<synchronous>, transform_indices = @transform_14, window_bounds = array<i64: 4, 2>}, {pipeline_mode = #tpu.pipeline_mode<synchronous>, transform_indices = @transform_15, window_bounds = array<i64: 4, 36>}, {pipeline_mode = #tpu.pipeline_mode<synchronous>, transform_indices = @transform_16, window_bounds = array<i64: 4, 1>}, {transform_indices = @transform_17, window_bounds = array<i64: 1, 4, 2>}, {transform_indices = @transform_18, window_bounds = array<i64: 1, 9, 4>}]} {
    %c0 = arith.constant 0 : index
    %c0_0 = arith.constant 0 : index
    %c0_1 = arith.constant 0 : index
    %0 = vector.load %arg1[%c0, %c0_0, %c0_1] : memref<1x75x176xf32, #tpu.memory_space<vmem>>, vector<1x75x176xf32>
    %1 = vector.shape_cast %0 : vector<1x75x176xf32> to vector<75x176xf32>
    %c0_2 = arith.constant 0 : index
    %c0_3 = arith.constant 0 : index
    %2 = vector.load %arg2[%c0_2, %c0_3] : memref<24x75xf32, #tpu.memory_space<vmem>>, vector<24x75xf32>
    %cst = arith.constant dense<0.000000e+00> : vector<24x176xf32>
    %3 = tpu.matmul %2, %1, %cst {dimension_numbers = #tpu.dot_dimension_numbers<[1], [0], [0], [1], [0, 0, 1, 1], [], []>} : vector<24x75xf32>, vector<75x176xf32>, vector<24x176xf32> -> vector<24x176xf32>
    %c0_4 = arith.constant 0 : index
    %c0_5 = arith.constant 0 : index
    %4 = vector.load %arg3[%c0_4, %c0_5] : memref<24x176xf32, #tpu.memory_space<vmem>>, vector<24x176xf32>
    %5 = arith.mulf %4, %3 : vector<24x176xf32>
    %c0_6 = arith.constant 0 : index
    %c0_7 = arith.constant 0 : index
    %6 = vector.load %arg4[%c0_6, %c0_7] : memref<24x1xf32, #tpu.memory_space<vmem>>, vector<24x1xf32>
    %7 = vector.broadcast %6 : vector<24x1xf32> to vector<24x176xf32>
    %8 = arith.addf %5, %7 : vector<24x176xf32>
    %cst_8 = arith.constant 5.000000e-01 : f32
    %9 = vector.broadcast %cst_8 : f32 to vector<24x176xf32>
    %10 = arith.mulf %9, %8 : vector<24x176xf32>
    %cst_9 = arith.constant 1.41421354 : f32
    %11 = vector.broadcast %cst_9 : f32 to vector<24x176xf32>
    %12 = arith.divf %8, %11 : vector<24x176xf32>
    %cst_10 = arith.constant 0.000000e+00 : f32
    %13 = vector.broadcast %cst_10 : f32 to vector<24x176xf32>
    %14 = arith.cmpf oge, %12, %13 : vector<24x176xf32>
    %cst_11 = arith.constant 1.000000e+00 : f32
    %cst_12 = arith.constant -1.000000e+00 : f32
    %15 = vector.broadcast %cst_11 : f32 to vector<24x176xf32>
    %16 = vector.broadcast %cst_12 : f32 to vector<24x176xf32>
    %17 = arith.select %14, %15, %16 : vector<24x176xi1>, vector<24x176xf32>
    %18 = math.absf %12 : vector<24x176xf32>
    %cst_13 = arith.constant 0.327591091 : f32
    %19 = vector.broadcast %cst_13 : f32 to vector<24x176xf32>
    %20 = arith.mulf %19, %18 : vector<24x176xf32>
    %cst_14 = arith.constant 1.000000e+00 : f32
    %21 = vector.broadcast %cst_14 : f32 to vector<24x176xf32>
    %22 = arith.addf %21, %20 : vector<24x176xf32>
    %cst_15 = arith.constant 1.000000e+00 : f32
    %23 = vector.broadcast %cst_15 : f32 to vector<24x176xf32>
    %24 = arith.divf %23, %22 : vector<24x176xf32>
    %cst_16 = arith.constant 1.06140542 : f32
    %25 = vector.broadcast %cst_16 : f32 to vector<24x176xf32>
    %26 = arith.mulf %25, %24 : vector<24x176xf32>
    %cst_17 = arith.constant -1.45315206 : f32
    %27 = vector.broadcast %cst_17 : f32 to vector<24x176xf32>
    %28 = arith.addf %26, %27 : vector<24x176xf32>
    %29 = arith.mulf %28, %24 : vector<24x176xf32>
    %cst_18 = arith.constant 1.42141378 : f32
    %30 = vector.broadcast %cst_18 : f32 to vector<24x176xf32>
    %31 = arith.addf %29, %30 : vector<24x176xf32>
    %32 = arith.mulf %31, %24 : vector<24x176xf32>
    %cst_19 = arith.constant -0.284496725 : f32
    %33 = vector.broadcast %cst_19 : f32 to vector<24x176xf32>
    %34 = arith.addf %32, %33 : vector<24x176xf32>
    %35 = arith.mulf %34, %24 : vector<24x176xf32>
    %cst_20 = arith.constant 0.254829586 : f32
    %36 = vector.broadcast %cst_20 : f32 to vector<24x176xf32>
    %37 = arith.addf %35, %36 : vector<24x176xf32>
    %38 = arith.mulf %37, %24 : vector<24x176xf32>
    %cst_21 = arith.constant 0.000000e+00 : f32
    %39 = vector.broadcast %cst_21 : f32 to vector<24x176xf32>
    %40 = arith.subf %39, %18 : vector<24x176xf32>
    %41 = arith.mulf %40, %18 : vector<24x176xf32>
    %42 = math.exp %41 : vector<24x176xf32>
    %43 = arith.mulf %38, %42 : vector<24x176xf32>
    %cst_22 = arith.constant 1.000000e+00 : f32
    %44 = vector.broadcast %cst_22 : f32 to vector<24x176xf32>
    %45 = arith.subf %44, %43 : vector<24x176xf32>
    %46 = arith.mulf %17, %45 : vector<24x176xf32>
    %cst_23 = arith.constant 1.000000e+00 : f32
    %47 = vector.broadcast %cst_23 : f32 to vector<24x176xf32>
    %48 = arith.addf %47, %46 : vector<24x176xf32>
    %49 = arith.mulf %10, %48 : vector<24x176xf32>
    %c0_24 = arith.constant 0 : index
    %c0_25 = arith.constant 0 : index
    %50 = vector.load %arg5[%c0_24, %c0_25] : memref<176x22xf32, #tpu.memory_space<vmem>>, vector<176x22xf32>
    %cst_26 = arith.constant dense<0.000000e+00> : vector<24x22xf32>
    %51 = tpu.matmul %49, %50, %cst_26 {dimension_numbers = #tpu.dot_dimension_numbers<[1], [0], [0], [1], [0, 0, 1, 1], [], []>} : vector<24x176xf32>, vector<176x22xf32>, vector<24x22xf32> -> vector<24x22xf32>
    %c0_27 = arith.constant 0 : index
    %c0_28 = arith.constant 0 : index
    %52 = vector.load %arg6[%c0_27, %c0_28] : memref<24x24xf32, #tpu.memory_space<vmem>>, vector<24x24xf32>
    %cst_29 = arith.constant dense<0.000000e+00> : vector<24x22xf32>
    %53 = tpu.matmul %52, %51, %cst_29 {dimension_numbers = #tpu.dot_dimension_numbers<[1], [0], [0], [1], [0, 0, 1, 1], [], []>} : vector<24x24xf32>, vector<24x22xf32>, vector<24x22xf32> -> vector<24x22xf32>
    %c0_30 = arith.constant 0 : index
    %c0_31 = arith.constant 0 : index
    %54 = vector.load %arg7[%c0_30, %c0_31] : memref<1x1xf32, #tpu.memory_space<vmem>>, vector<1x1xf32>
    %55 = vector.broadcast %54 : vector<1x1xf32> to vector<24x22xf32>
    %56 = arith.addf %53, %55 : vector<24x22xf32>
    %cst_32 = arith.constant dense<0xFF800000> : vector<22xf32>
    %57 = vector.multi_reduction <maximumf>, %56, %cst_32 [0] : vector<24x22xf32> to vector<22xf32>
    %58 = vector.shape_cast %57 : vector<22xf32> to vector<1x22xf32>
    %59 = vector.broadcast %58 : vector<1x22xf32> to vector<24x22xf32>
    %60 = arith.subf %56, %59 : vector<24x22xf32>
    %61 = math.exp %60 : vector<24x22xf32>
    %cst_33 = arith.constant dense<0.000000e+00> : vector<22xf32>
    %62 = vector.multi_reduction <add>, %61, %cst_33 [0] : vector<24x22xf32> to vector<22xf32>
    %63 = vector.shape_cast %62 : vector<22xf32> to vector<1x22xf32>
    %64 = tpu.reciprocal %63 {approx = true} : vector<1x22xf32> -> vector<1x22xf32>
    %65 = vector.broadcast %64 : vector<1x22xf32> to vector<24x22xf32>
    %66 = arith.mulf %61, %65 : vector<24x22xf32>
    %c0_34 = arith.constant 0 : index
    %c0_35 = arith.constant 0 : index
    %67 = vector.load %arg8[%c0_34, %c0_35] : memref<22x176xf32, #tpu.memory_space<vmem>>, vector<22x176xf32>
    %cst_36 = arith.constant dense<0.000000e+00> : vector<24x176xf32>
    %68 = tpu.matmul %66, %67, %cst_36 {dimension_numbers = #tpu.dot_dimension_numbers<[1], [0], [0], [1], [0, 0, 1, 1], [], []>} : vector<24x22xf32>, vector<22x176xf32>, vector<24x176xf32> -> vector<24x176xf32>
    %c0_37 = arith.constant 0 : index
    %c0_38 = arith.constant 0 : index
    %69 = vector.load %arg9[%c0_37, %c0_38] : memref<9x24xf32, #tpu.memory_space<vmem>>, vector<9x24xf32>
    %70 = arith.mulf %68, %49 : vector<24x176xf32>
    %cst_39 = arith.constant dense<0.000000e+00> : vector<9x176xf32>
    %71 = tpu.matmul %69, %70, %cst_39 {dimension_numbers = #tpu.dot_dimension_numbers<[1], [0], [0], [1], [0, 0, 1, 1], [], []>} : vector<9x24xf32>, vector<24x176xf32>, vector<9x176xf32> -> vector<9x176xf32>
    %c0_40 = arith.constant 0 : index
    %c0_41 = arith.constant 0 : index
    %72 = vector.load %arg10[%c0_40, %c0_41] : memref<9x176xf32, #tpu.memory_space<vmem>>, vector<9x176xf32>
    %73 = arith.mulf %72, %71 : vector<9x176xf32>
    %c0_42 = arith.constant 0 : index
    %c0_43 = arith.constant 0 : index
    %74 = vector.load %arg5[%c0_42, %c0_43] : memref<176x22xf32, #tpu.memory_space<vmem>>, vector<176x22xf32>
    %cst_44 = arith.constant dense<0.000000e+00> : vector<9x22xf32>
    %75 = tpu.matmul %73, %74, %cst_44 {dimension_numbers = #tpu.dot_dimension_numbers<[1], [0], [0], [1], [0, 0, 1, 1], [], []>} : vector<9x176xf32>, vector<176x22xf32>, vector<9x22xf32> -> vector<9x22xf32>
    %c0_45 = arith.constant 0 : index
    %c0_46 = arith.constant 0 : index
    %76 = vector.load %arg11[%c0_45, %c0_46] : memref<9x1xf32, #tpu.memory_space<vmem>>, vector<9x1xf32>
    %77 = vector.broadcast %76 : vector<9x1xf32> to vector<9x22xf32>
    %78 = arith.mulf %77, %75 : vector<9x22xf32>
    %c0_47 = arith.constant 0 : index
    %c0_48 = arith.constant 0 : index
    %79 = vector.load %arg12[%c0_47, %c0_48] : memref<9x1xf32, #tpu.memory_space<vmem>>, vector<9x1xf32>
    %80 = vector.broadcast %79 : vector<9x1xf32> to vector<9x22xf32>
    %81 = arith.addf %78, %80 : vector<9x22xf32>
    %cst_49 = arith.constant 5.000000e-01 : f32
    %82 = vector.broadcast %cst_49 : f32 to vector<9x22xf32>
    %83 = arith.mulf %82, %81 : vector<9x22xf32>
    %cst_50 = arith.constant 1.41421354 : f32
    %84 = vector.broadcast %cst_50 : f32 to vector<9x22xf32>
    %85 = arith.divf %81, %84 : vector<9x22xf32>
    %cst_51 = arith.constant 0.000000e+00 : f32
    %86 = vector.broadcast %cst_51 : f32 to vector<9x22xf32>
    %87 = arith.cmpf oge, %85, %86 : vector<9x22xf32>
    %cst_52 = arith.constant 1.000000e+00 : f32
    %cst_53 = arith.constant -1.000000e+00 : f32
    %88 = vector.broadcast %cst_52 : f32 to vector<9x22xf32>
    %89 = vector.broadcast %cst_53 : f32 to vector<9x22xf32>
    %90 = arith.select %87, %88, %89 : vector<9x22xi1>, vector<9x22xf32>
    %91 = math.absf %85 : vector<9x22xf32>
    %cst_54 = arith.constant 0.327591091 : f32
    %92 = vector.broadcast %cst_54 : f32 to vector<9x22xf32>
    %93 = arith.mulf %92, %91 : vector<9x22xf32>
    %cst_55 = arith.constant 1.000000e+00 : f32
    %94 = vector.broadcast %cst_55 : f32 to vector<9x22xf32>
    %95 = arith.addf %94, %93 : vector<9x22xf32>
    %cst_56 = arith.constant 1.000000e+00 : f32
    %96 = vector.broadcast %cst_56 : f32 to vector<9x22xf32>
    %97 = arith.divf %96, %95 : vector<9x22xf32>
    %cst_57 = arith.constant 1.06140542 : f32
    %98 = vector.broadcast %cst_57 : f32 to vector<9x22xf32>
    %99 = arith.mulf %98, %97 : vector<9x22xf32>
    %cst_58 = arith.constant -1.45315206 : f32
    %100 = vector.broadcast %cst_58 : f32 to vector<9x22xf32>
    %101 = arith.addf %99, %100 : vector<9x22xf32>
    %102 = arith.mulf %101, %97 : vector<9x22xf32>
    %cst_59 = arith.constant 1.42141378 : f32
    %103 = vector.broadcast %cst_59 : f32 to vector<9x22xf32>
    %104 = arith.addf %102, %103 : vector<9x22xf32>
    %105 = arith.mulf %104, %97 : vector<9x22xf32>
    %cst_60 = arith.constant -0.284496725 : f32
    %106 = vector.broadcast %cst_60 : f32 to vector<9x22xf32>
    %107 = arith.addf %105, %106 : vector<9x22xf32>
    %108 = arith.mulf %107, %97 : vector<9x22xf32>
    %cst_61 = arith.constant 0.254829586 : f32
    %109 = vector.broadcast %cst_61 : f32 to vector<9x22xf32>
    %110 = arith.addf %108, %109 : vector<9x22xf32>
    %111 = arith.mulf %110, %97 : vector<9x22xf32>
    %cst_62 = arith.constant 0.000000e+00 : f32
    %112 = vector.broadcast %cst_62 : f32 to vector<9x22xf32>
    %113 = arith.subf %112, %91 : vector<9x22xf32>
    %114 = arith.mulf %113, %91 : vector<9x22xf32>
    %115 = math.exp %114 : vector<9x22xf32>
    %116 = arith.mulf %111, %115 : vector<9x22xf32>
    %cst_63 = arith.constant 1.000000e+00 : f32
    %117 = vector.broadcast %cst_63 : f32 to vector<9x22xf32>
    %118 = arith.subf %117, %116 : vector<9x22xf32>
    %119 = arith.mulf %90, %118 : vector<9x22xf32>
    %cst_64 = arith.constant 1.000000e+00 : f32
    %120 = vector.broadcast %cst_64 : f32 to vector<9x22xf32>
    %121 = arith.addf %120, %119 : vector<9x22xf32>
    %122 = arith.mulf %83, %121 : vector<9x22xf32>
    %c0_65 = arith.constant 0 : index
    %c0_66 = arith.constant 0 : index
    %123 = vector.load %arg13[%c0_65, %c0_66] : memref<22x4xf32, #tpu.memory_space<vmem>>, vector<22x4xf32>
    %cst_67 = arith.constant dense<0.000000e+00> : vector<9x4xf32>
    %124 = tpu.matmul %122, %123, %cst_67 {dimension_numbers = #tpu.dot_dimension_numbers<[1], [0], [0], [1], [0, 0, 1, 1], [], []>} : vector<9x22xf32>, vector<22x4xf32>, vector<9x4xf32> -> vector<9x4xf32>
    %c0_68 = arith.constant 0 : index
    %c0_69 = arith.constant 0 : index
    %c0_70 = arith.constant 0 : index
    %125 = vector.load %arg19[%c0_68, %c0_69, %c0_70] : memref<1x9x4xf32, #tpu.memory_space<vmem>>, vector<1x9x4xf32>
    %126 = vector.shape_cast %125 : vector<1x9x4xf32> to vector<9x4xf32>
    %127 = vector.shape_cast %124 : vector<9x4xf32> to vector<1x9x4xf32>
    tpu.vector_store %arg19[%c0_68, %c0_69, %c0_70], %127 {strides = array<i32>} : memref<1x9x4xf32, #tpu.memory_space<vmem>>, vector<1x9x4xf32>,
    %128 = tpu.concatenate %124, %124, %124, %124 in 0 : vector<9x4xf32>, vector<9x4xf32>, vector<9x4xf32>, vector<9x4xf32> -> vector<36x4xf32>
    %c0_71 = arith.constant 0 : index
    %c0_72 = arith.constant 0 : index
    %129 = vector.load %arg14[%c0_71, %c0_72] : memref<36x4xf32, #tpu.memory_space<vmem>>, vector<36x4xf32>
    %130 = arith.mulf %129, %128 : vector<36x4xf32>
    %c0_73 = arith.constant 0 : index
    %c0_74 = arith.constant 0 : index
    %131 = vector.load %arg15[%c0_73, %c0_74] : memref<4x2xf32, #tpu.memory_space<vmem>>, vector<4x2xf32>
    %cst_75 = arith.constant dense<0.000000e+00> : vector<36x2xf32>
    %132 = tpu.matmul %130, %131, %cst_75 {dimension_numbers = #tpu.dot_dimension_numbers<[1], [0], [0], [1], [0, 0, 1, 1], [], []>} : vector<36x4xf32>, vector<4x2xf32>, vector<36x2xf32> -> vector<36x2xf32>
    %c0_76 = arith.constant 0 : index
    %c0_77 = arith.constant 0 : index
    %133 = vector.load %arg16[%c0_76, %c0_77] : memref<4x36xf32, #tpu.memory_space<vmem>>, vector<4x36xf32>
    %cst_78 = arith.constant dense<0.000000e+00> : vector<4x2xf32>
    %134 = tpu.matmul %133, %132, %cst_78 {dimension_numbers = #tpu.dot_dimension_numbers<[1], [0], [0], [1], [0, 0, 1, 1], [], []>} : vector<4x36xf32>, vector<36x2xf32>, vector<4x2xf32> -> vector<4x2xf32>
    %c0_79 = arith.constant 0 : index
    %c0_80 = arith.constant 0 : index
    %135 = vector.load %arg17[%c0_79, %c0_80] : memref<4x1xf32, #tpu.memory_space<vmem>>, vector<4x1xf32>
    %136 = vector.broadcast %135 : vector<4x1xf32> to vector<4x2xf32>
    %137 = arith.addf %134, %136 : vector<4x2xf32>
    %cst_81 = arith.constant dense<0xFF800000> : vector<2xf32>
    %138 = vector.multi_reduction <maximumf>, %137, %cst_81 [0] : vector<4x2xf32> to vector<2xf32>
    %139 = vector.shape_cast %138 : vector<2xf32> to vector<1x2xf32>
    %140 = vector.broadcast %139 : vector<1x2xf32> to vector<4x2xf32>
    %141 = arith.subf %137, %140 : vector<4x2xf32>
    %142 = math.exp %141 : vector<4x2xf32>
    %cst_82 = arith.constant dense<0.000000e+00> : vector<2xf32>
    %143 = vector.multi_reduction <add>, %142, %cst_82 [0] : vector<4x2xf32> to vector<2xf32>
    %144 = vector.shape_cast %143 : vector<2xf32> to vector<1x2xf32>
    %145 = tpu.reciprocal %144 {approx = true} : vector<1x2xf32> -> vector<1x2xf32>
    %146 = vector.broadcast %145 : vector<1x2xf32> to vector<4x2xf32>
    %147 = arith.mulf %142, %146 : vector<4x2xf32>
    %c0_83 = arith.constant 0 : index
    %c0_84 = arith.constant 0 : index
    %c0_85 = arith.constant 0 : index
    %148 = vector.load %arg18[%c0_83, %c0_84, %c0_85] : memref<1x4x2xf32, #tpu.memory_space<vmem>>, vector<1x4x2xf32>
    %149 = vector.shape_cast %148 : vector<1x4x2xf32> to vector<4x2xf32>
    %150 = vector.shape_cast %147 : vector<4x2xf32> to vector<1x4x2xf32>
    tpu.vector_store %arg18[%c0_83, %c0_84, %c0_85], %150 {strides = array<i32>} : memref<1x4x2xf32, #tpu.memory_space<vmem>>, vector<1x4x2xf32>,
    return
  }
  func.func @transform_0(%arg0: i32) -> (i32, i32, i32) {
    %c0_i32 = arith.constant 0 : i32
    %c0_i32_0 = arith.constant 0 : i32
    %c0_i32_1 = arith.constant 0 : i32
    return %arg0, %c0_i32, %c0_i32_0 : i32, i32, i32
  }
  func.func @transform_1(%arg0: i32) -> (i32, i32) {
    %c0_i32 = arith.constant 0 : i32
    %c0_i32_0 = arith.constant 0 : i32
    %c0_i32_1 = arith.constant 0 : i32
    return %c0_i32, %c0_i32_0 : i32, i32
  }
  func.func @transform_2(%arg0: i32) -> (i32, i32) {
    %c0_i32 = arith.constant 0 : i32
    %c0_i32_0 = arith.constant 0 : i32
    %c0_i32_1 = arith.constant 0 : i32
    return %c0_i32, %c0_i32_0 : i32, i32
  }
  func.func @transform_3(%arg0: i32) -> (i32, i32) {
    %c0_i32 = arith.constant 0 : i32
    %c0_i32_0 = arith.constant 0 : i32
    %c0_i32_1 = arith.constant 0 : i32
    return %c0_i32, %c0_i32_0 : i32, i32
  }
  func.func @transform_4(%arg0: i32) -> (i32, i32) {
    %c0_i32 = arith.constant 0 : i32
    %c0_i32_0 = arith.constant 0 : i32
    %c0_i32_1 = arith.constant 0 : i32
    return %c0_i32, %c0_i32_0 : i32, i32
  }
  func.func @transform_5(%arg0: i32) -> (i32, i32) {
    %c0_i32 = arith.constant 0 : i32
    %c0_i32_0 = arith.constant 0 : i32
    %c0_i32_1 = arith.constant 0 : i32
    return %c0_i32, %c0_i32_0 : i32, i32
  }
  func.func @transform_6(%arg0: i32) -> (i32, i32) {
    %c0_i32 = arith.constant 0 : i32
    %c0_i32_0 = arith.constant 0 : i32
    %c0_i32_1 = arith.constant 0 : i32
    return %c0_i32, %c0_i32_0 : i32, i32
  }
  func.func @transform_7(%arg0: i32) -> (i32, i32) {
    %c0_i32 = arith.constant 0 : i32
    %c0_i32_0 = arith.constant 0 : i32
    %c0_i32_1 = arith.constant 0 : i32
    return %c0_i32, %c0_i32_0 : i32, i32
  }
  func.func @transform_8(%arg0: i32) -> (i32, i32) {
    %c0_i32 = arith.constant 0 : i32
    %c0_i32_0 = arith.constant 0 : i32
    %c0_i32_1 = arith.constant 0 : i32
    return %c0_i32, %c0_i32_0 : i32, i32
  }
  func.func @transform_9(%arg0: i32) -> (i32, i32) {
    %c0_i32 = arith.constant 0 : i32
    %c0_i32_0 = arith.constant 0 : i32
    %c0_i32_1 = arith.constant 0 : i32
    return %c0_i32, %c0_i32_0 : i32, i32
  }
  func.func @transform_10(%arg0: i32) -> (i32, i32) {
    %c0_i32 = arith.constant 0 : i32
    %c0_i32_0 = arith.constant 0 : i32
    %c0_i32_1 = arith.constant 0 : i32
    return %c0_i32, %c0_i32_0 : i32, i32
  }
  func.func @transform_11(%arg0: i32) -> (i32, i32) {
    %c0_i32 = arith.constant 0 : i32
    %c0_i32_0 = arith.constant 0 : i32
    %c0_i32_1 = arith.constant 0 : i32
    return %c0_i32, %c0_i32_0 : i32, i32
  }
  func.func @transform_12(%arg0: i32) -> (i32, i32) {
    %c0_i32 = arith.constant 0 : i32
    %c0_i32_0 = arith.constant 0 : i32
    %c0_i32_1 = arith.constant 0 : i32
    return %c0_i32, %c0_i32_0 : i32, i32
  }
  func.func @transform_13(%arg0: i32) -> (i32, i32) {
    %c0_i32 = arith.constant 0 : i32
    %c0_i32_0 = arith.constant 0 : i32
    %c0_i32_1 = arith.constant 0 : i32
    return %c0_i32, %c0_i32_0 : i32, i32
  }
  func.func @transform_14(%arg0: i32) -> (i32, i32) {
    %c0_i32 = arith.constant 0 : i32
    %c0_i32_0 = arith.constant 0 : i32
    %c0_i32_1 = arith.constant 0 : i32
    return %c0_i32, %c0_i32_0 : i32, i32
  }
  func.func @transform_15(%arg0: i32) -> (i32, i32) {
    %c0_i32 = arith.constant 0 : i32
    %c0_i32_0 = arith.constant 0 : i32
    %c0_i32_1 = arith.constant 0 : i32
    return %c0_i32, %c0_i32_0 : i32, i32
  }
  func.func @transform_16(%arg0: i32) -> (i32, i32) {
    %c0_i32 = arith.constant 0 : i32
    %c0_i32_0 = arith.constant 0 : i32
    %c0_i32_1 = arith.constant 0 : i32
    return %c0_i32, %c0_i32_0 : i32, i32
  }
  func.func @transform_17(%arg0: i32) -> (i32, i32, i32) {
    %c0_i32 = arith.constant 0 : i32
    %c0_i32_0 = arith.constant 0 : i32
    %c0_i32_1 = arith.constant 0 : i32
    return %arg0, %c0_i32, %c0_i32_0 : i32, i32, i32
  }
  func.func @transform_18(%arg0: i32) -> (i32, i32, i32) {
    %c0_i32 = arith.constant 0 : i32
    %c0_i32_0 = arith.constant 0 : i32
    %c0_i32_1 = arith.constant 0 : i32
    return %arg0, %c0_i32, %c0_i32_0 : i32, i32, i32
  }
}

</mosaic_0001>

<llo_original>
// kernel: tpu_custom_call.1
$region0: #{tpu_custom_call.1}
  #allocation0 [shape = 'u32[]', space=smem, size = 0x4, offset = 0x4, fixed_abs, tag = 'smem constant byte address 0x4 - core index']
  #allocation1 [shape = 'u32[144,128]{1,0:T(1,128)}', space=vmem, size = 0x12000, scoped, tag = 'internal scratch']
  #allocation2 [shape = 'f32[1,1]{1,0:T(1,128)S(1)}', space=vmem, size = 0x200, scoped, tag = 'scoped memory for tpu_custom_call.1']
  %s0 = inlined_call_operand.vmem [shape: f32[1,75,176], index: 0, kind: input, shape index: {}]
  %s1 = inlined_call_operand.vmem [shape: f32[24,75], index: 1, kind: input, shape index: {}]
  %s2 = inlined_call_operand.vmem [shape: f32[24,176], index: 2, kind: input, shape index: {}]
  %s3 = inlined_call_operand.vmem [shape: f32[24,1], index: 3, kind: input, shape index: {}]
  %s4 = inlined_call_operand.vmem [shape: f32[176,22], index: 4, kind: input, shape index: {}]
  %s5 = inlined_call_operand.vmem [shape: f32[24,24], index: 5, kind: input, shape index: {}]
  %s6 = inlined_call_operand.<no memory space> [shape: f32[1,1], index: 6, kind: input, shape index: {}]
  %s7 = inlined_call_operand.vmem [shape: f32[22,176], index: 7, kind: input, shape index: {}]
  %s8 = inlined_call_operand.vmem [shape: f32[9,24], index: 8, kind: input, shape index: {}]
  %s9 = inlined_call_operand.vmem [shape: f32[9,176], index: 9, kind: input, shape index: {}]
  %s10 = inlined_call_operand.vmem [shape: f32[9,1], index: 10, kind: input, shape index: {}]
  %s11 = inlined_call_operand.vmem [shape: f32[9,1], index: 11, kind: input, shape index: {}]
  %s12 = inlined_call_operand.vmem [shape: f32[22,4], index: 12, kind: input, shape index: {}]
  %s13 = inlined_call_operand.vmem [shape: f32[36,4], index: 13, kind: input, shape index: {}]
  %s14 = inlined_call_operand.vmem [shape: f32[4,2], index: 14, kind: input, shape index: {}]
  %s15 = inlined_call_operand.vmem [shape: f32[4,36], index: 15, kind: input, shape index: {}]
  %s16 = inlined_call_operand.vmem [shape: f32[4,1], index: 16, kind: input, shape index: {}]
  %s17 = inlined_call_operand.vmem [shape: f32[1,4,2], index: 17, kind: output, shape index: {0}]
  %s18 = inlined_call_operand.vmem [shape: f32[1,9,4], index: 18, kind: output, shape index: {1}]
  %19 = xla_tuple %s17, %s18
  %s20 = sld [smem:[#allocation0]]
  $region86: #{tpu_custom_call.1} parent=0
    _
  %s22 = ssub.s32 1, %s20
  %s23 = scalar_select 0, %s22, %s20
  %v24 = vstv %s6
  %25 = vst [vmem:[#allocation2] sm:$0x1] %v24
  // Predicated region
  $region2: #{tpu_custom_call.1} parent=0 // pred_check
    _
  $region3: #{tpu_custom_call.1} parent=0 // pred_check_branch
    %27 = sbr.rel (0) target = $region5
  $region4: #{tpu_custom_call.1} parent=0 // pred_region
    _
  $region5: #{tpu_custom_call.1} parent=0 // pred_fallthru
    _
  // Predicated region
  $region6: #{tpu_custom_call.1} parent=0 // pred_check
    _
  $region7: #{tpu_custom_call.1} parent=0 // pred_check_branch
    %29 = sbr.rel (0) target = $region9
  $region8: #{tpu_custom_call.1} parent=0 // pred_region
    _
  $region9: #{tpu_custom_call.1} parent=0 // pred_fallthru
    _
  // Predicated region
  $region10: #{tpu_custom_call.1} parent=0 // pred_check
    _
  $region11: #{tpu_custom_call.1} parent=0 // pred_check_branch
    %31 = sbr.rel (0) target = $region13
  $region12: #{tpu_custom_call.1} parent=0 // pred_region
    _
  $region13: #{tpu_custom_call.1} parent=0 // pred_fallthru
    _
  // Predicated region
  $region14: #{tpu_custom_call.1} parent=0 // pred_check
    _
  $region15: #{tpu_custom_call.1} parent=0 // pred_check_branch
    %33 = sbr.rel (0) target = $region17
  $region16: #{tpu_custom_call.1} parent=0 // pred_region
    _
  $region17: #{tpu_custom_call.1} parent=0 // pred_fallthru
    _
  // Predicated region
  $region18: #{tpu_custom_call.1} parent=0 // pred_check
    _
  $region19: #{tpu_custom_call.1} parent=0 // pred_check_branch
    %35 = sbr.rel (0) target = $region21
  $region20: #{tpu_custom_call.1} parent=0 // pred_region
    _
  $region21: #{tpu_custom_call.1} parent=0 // pred_fallthru
    _
  // Predicated region
  $region22: #{tpu_custom_call.1} parent=0 // pred_check
    _
  $region23: #{tpu_custom_call.1} parent=0 // pred_check_branch
    %37 = sbr.rel (0) target = $region25
  $region24: #{tpu_custom_call.1} parent=0 // pred_region
    _
  $region25: #{tpu_custom_call.1} parent=0 // pred_fallthru
    _
  // Predicated region
  $region26: #{tpu_custom_call.1} parent=0 // pred_check
    _
  $region27: #{tpu_custom_call.1} parent=0 // pred_check_branch
    %39 = sbr.rel (0) target = $region29
  $region28: #{tpu_custom_call.1} parent=0 // pred_region
    _
  $region29: #{tpu_custom_call.1} parent=0 // pred_fallthru
    _
  // Predicated region
  $region30: #{tpu_custom_call.1} parent=0 // pred_check
    _
  $region31: #{tpu_custom_call.1} parent=0 // pred_check_branch
    %41 = sbr.rel (0) target = $region33
  $region32: #{tpu_custom_call.1} parent=0 // pred_region
    _
  $region33: #{tpu_custom_call.1} parent=0 // pred_fallthru
    _
  // Predicated region
  $region34: #{tpu_custom_call.1} parent=0 // pred_check
    _
  $region35: #{tpu_custom_call.1} parent=0 // pred_check_branch
    %43 = sbr.rel (0) target = $region37
  $region36: #{tpu_custom_call.1} parent=0 // pred_region
    _
  $region37: #{tpu_custom_call.1} parent=0 // pred_fallthru
    _
  // Predicated region
  $region38: #{tpu_custom_call.1} parent=0 // pred_check
    _
  $region39: #{tpu_custom_call.1} parent=0 // pred_check_branch
    %45 = sbr.rel (0) target = $region41
  $region40: #{tpu_custom_call.1} parent=0 // pred_region
    _
  $region41: #{tpu_custom_call.1} parent=0 // pred_fallthru
    _
  // Predicated region
  $region42: #{tpu_custom_call.1} parent=0 // pred_check
    _
  $region43: #{tpu_custom_call.1} parent=0 // pred_check_branch
    %47 = sbr.rel (0) target = $region45
  $region44: #{tpu_custom_call.1} parent=0 // pred_region
    _
  $region45: #{tpu_custom_call.1} parent=0 // pred_fallthru
    _
  // Predicated region
  $region46: #{tpu_custom_call.1} parent=0 // pred_check
    _
  $region47: #{tpu_custom_call.1} parent=0 // pred_check_branch
    %49 = sbr.rel (0) target = $region49
  $region48: #{tpu_custom_call.1} parent=0 // pred_region
    _
  $region49: #{tpu_custom_call.1} parent=0 // pred_fallthru
    _
  // Predicated region
  $region50: #{tpu_custom_call.1} parent=0 // pred_check
    _
  $region51: #{tpu_custom_call.1} parent=0 // pred_check_branch
    %51 = sbr.rel (0) target = $region53
  $region52: #{tpu_custom_call.1} parent=0 // pred_region
    _
  $region53: #{tpu_custom_call.1} parent=0 // pred_fallthru
    _
  // Predicated region
  $region54: #{tpu_custom_call.1} parent=0 // pred_check
    _
  $region55: #{tpu_custom_call.1} parent=0 // pred_check_branch
    %53 = sbr.rel (0) target = $region57
  $region56: #{tpu_custom_call.1} parent=0 // pred_region
    _
  $region57: #{tpu_custom_call.1} parent=0 // pred_fallthru
    _
  // Predicated region
  $region58: #{tpu_custom_call.1} parent=0 // pred_check
    _
  $region59: #{tpu_custom_call.1} parent=0 // pred_check_branch
    %55 = sbr.rel (0) target = $region61
  $region60: #{tpu_custom_call.1} parent=0 // pred_region
    _
  $region61: #{tpu_custom_call.1} parent=0 // pred_fallthru
    _
  // Predicated region
  $region62: #{tpu_custom_call.1} parent=0 // pred_check
    _
  $region63: #{tpu_custom_call.1} parent=0 // pred_check_branch
    %57 = sbr.rel (0) target = $region65
  $region64: #{tpu_custom_call.1} parent=0 // pred_region
    _
  $region65: #{tpu_custom_call.1} parent=0 // pred_fallthru
    _
  // Predicated region
  $region66: #{tpu_custom_call.1} parent=0 // pred_check
    _
  $region67: #{tpu_custom_call.1} parent=0 // pred_check_branch
    %59 = sbr.rel (0) target = $region69
  $region68: #{tpu_custom_call.1} parent=0 // pred_region
    _
  $region69: #{tpu_custom_call.1} parent=0 // pred_fallthru
    _
  %v60 = vld [vmem:[%s0] sm:$0xff]
  %v61 = vld [vmem:[%s0 + $0x8] sm:$0xff]
  %v62 = vld [vmem:[%s0 + $0x10] sm:$0xff]
  %v63 = vld [vmem:[%s0 + $0x18] sm:$0xff]
  %v64 = vld [vmem:[%s0 + $0x20] sm:$0xff]
  %v65 = vld [vmem:[%s0 + $0x28] sm:$0xff]
  %v66 = vld [vmem:[%s0 + $0x30] sm:$0xff]
  %v67 = vld [vmem:[%s0 + $0x38] sm:$0xff]
  %v68 = vld [vmem:[%s0 + $0x40] sm:$0xff]
  %v69 = vld [vmem:[%s0 + $0x48] sm:$0xff]
  %v70 = vld [vmem:[%s0 + $0x50] sm:$0xff]
  %v71 = vld [vmem:[%s0 + $0x58] sm:$0xff]
  %v72 = vld [vmem:[%s0 + $0x60] sm:$0xff]
  %v73 = vld [vmem:[%s0 + $0x68] sm:$0xff]
  %v74 = vld [vmem:[%s0 + $0x70] sm:$0xff]
  %v75 = vld [vmem:[%s0 + $0x78] sm:$0xff]
  %v76 = vld [vmem:[%s0 + $0x80] sm:$0xff]
  %v77 = vld [vmem:[%s0 + $0x88] sm:$0xff]
  %v78 = vld [vmem:[%s0 + $0x90] sm:$0x7]
  %v79 = vld [vmem:[%s0 + $0x98] sm:$0x7]
  %v80 = vld [vmem:[%s1] sm:$0xff]
  %v81 = vld [vmem:[%s1 + $0x8] sm:$0xff]
  %v82 = vld [vmem:[%s1 + $0x10] sm:$0xff]
  %vm83 = vcmask 613376
  %v85 = vsel %vm83, %v80, 0
  %v88 = vsel %vm83, %v81, 0
  %v91 = vsel %vm83, %v82, 0
  %vm93 = vcmask 1042432
  %v95 = vsel %vm93, %v78, 0
  %v98 = vsel %vm93, %v79, 0
  %100 = vmatprep.subr.mxu0 0.0
  %101 = vmatpush1.msra.mxu0 0.0
  %102 = vmatprep.subr.mxu0 0.0
  %103 = vmatpush1.msra.mxu0 0.0
  %104 = vmatprep.subr.mxu0 0.0
  %105 = vmatpush1.msra.mxu0 0.0
  %106 = vmatprep.subr.mxu0 0.0
  %107 = vmatpush1.msra.mxu0 0.0
  %108 = vmatprep.subr.mxu0 0.0
  %109 = vmatpush1.msra.mxu0 0.0
  %110 = vmatprep.subr.mxu0 0.0
  %111 = vmatpush1.msra.mxu0 0.0
  %112 = vmatprep.subr.mxu0 %v98
  %113 = vmatpush1.msra.mxu0 %v95
  %114 = vmatprep.subr.mxu0 %v77
  %115 = vmatpush1.msra.mxu0 %v76
  %116 = vmatprep.subr.mxu0 %v75
  %117 = vmatpush1.msra.mxu0 %v74
  %118 = vmatprep.subr.mxu0 %v73
  %119 = vmatpush1.msra.mxu0 %v72
  %120 = vmatprep.subr.mxu0 %v71
  %121 = vmatpush1.msra.mxu0 %v70
  %122 = vmatprep.subr.mxu0 %v69
  %123 = vmatpush1.msra.mxu0 %v68
  %124 = vmatprep.subr.mxu0 %v67
  %125 = vmatpush1.msra.mxu0 %v66
  %126 = vmatprep.subr.mxu0 %v65
  %127 = vmatpush1.msra.mxu0 %v64
  %128 = vmatprep.subr.mxu0 %v63
  %129 = vmatpush1.msra.mxu0 %v62
  %130 = vmatprep.subr.mxu0 %v61
  %131 = vmatpush1.msra.mxu0 %v60
  %132 = vmatprep.subr.mxu0 0.0
  %133 = vmatpush2.msra.mxu0 0.0
  %134 = vmatprep.subr.mxu0 0.0
  %135 = vmatpush2.msra.mxu0 0.0
  %136 = vmatprep.subr.mxu0 0.0
  %137 = vmatpush2.msra.mxu0 0.0
  %138 = vmatprep.subr.mxu0 0.0
  %139 = vmatpush2.msra.mxu0 0.0
  %140 = vmatprep.subr.mxu0 0.0
  %141 = vmatpush2.msra.mxu0 0.0
  %142 = vmatprep.subr.mxu0 0.0
  %143 = vmatpush2.msra.mxu0 0.0
  %144 = vmatprep.subr.mxu0 0.0
  %145 = vmatpush2.msra.mxu0 0.0
  %146 = vmatprep.subr.mxu0 0.0
  %147 = vmatpush2.msra.mxu0 0.0
  %148 = vmatprep.subr.mxu0 0.0
  %149 = vmatpush2.msra.mxu0 0.0
  %150 = vmatprep.subr.mxu0 0.0
  %151 = vmatpush2.msra.mxu0 0.0
  %152 = vmatprep.subr.mxu0 0.0
  %153 = vmatpush2.msra.mxu0 0.0
  %154 = vmatprep.subr.mxu0 0.0
  %155 = vmatpush2.msra.mxu0 0.0
  %156 = vmatprep.subr.mxu0 0.0
  %157 = vmatpush2.msra.mxu0 0.0
  %158 = vmatprep.subr.mxu0 0.0
  %159 = vmatpush2.msra.mxu0 0.0
  %160 = vmatprep.subr.mxu0 0.0
  %161 = vmatpush2.msra.mxu0 0.0
  %162 = vmatprep.subr.mxu0 0.0
  %163 = vmatpush2.msra.mxu0 0.0
  %164 = vmatprep.mubr.f32.mxu0 0.0
  %165 = vmatmul.mubr.f32.gmra.mxu0 %v85
  %v166 = vpop.f32.mrf.mxu0
  %v167 = vadd.f32 0.0, %v166
  %v168 = vpop.f32.mrf.mxu0
  %v169 = vadd.f32 0.0, %v168
  %170 = vmatprep.mubr.f32.mxu0 0.0
  %171 = vmatmul.mubr.f32.gmra.mxu0 %v88
  %v172 = vpop.f32.mrf.mxu0
  %v173 = vadd.f32 0.0, %v172
  %v174 = vpop.f32.mrf.mxu0
  %v175 = vadd.f32 0.0, %v174
  %176 = vmatprep.mubr.f32.mxu0 0.0
  %177 = vmatmul.mubr.f32.gmra.mxu0 %v91
  %v178 = vpop.f32.mrf.mxu0
  %v179 = vadd.f32 0.0, %v178
  %v180 = vpop.f32.mrf.mxu0
  %v181 = vadd.f32 0.0, %v180
  %182 = vdwg.mxu0
  %v183 = vld [vmem:[%s2] sm:$0xff]
  %v184 = vld [vmem:[%s2 + $0x8] sm:$0xff]
  %v185 = vld [vmem:[%s2 + $0x10] sm:$0xff]
  %v186 = vld [vmem:[%s2 + $0x18] sm:$0xff]
  %v187 = vld [vmem:[%s2 + $0x20] sm:$0xff]
  %v188 = vld [vmem:[%s2 + $0x28] sm:$0xff]
  %v189 = vmul.f32 %v183, %v167
  %v190 = vmul.f32 %v184, %v169
  %v191 = vmul.f32 %v185, %v173
  %v192 = vmul.f32 %v186, %v175
  %v193 = vmul.f32 %v187, %v179
  %v194 = vmul.f32 %v188, %v181
  %v195 = vld [vmem:[%s3] sm:$0xff]
  %v196 = vld [vmem:[%s3 + $0x8] sm:$0xff]
  %v197 = vld [vmem:[%s3 + $0x10] sm:$0xff]
  %199 = vset.pattern.permute.xlu0 0
  %200 = vperm.xlu0 %199, %v195
  %v201 = vpop.permute.xlu0 %200
  %204 = vset.pattern.permute.xlu0 0
  %205 = vperm.xlu0 %204, %v196
  %v206 = vpop.permute.xlu0 %205
  %209 = vset.pattern.permute.xlu0 0
  %210 = vperm.xlu0 %209, %v197
  %v211 = vpop.permute.xlu0 %210
  %v213 = vadd.f32 %v189, %v201
  %v214 = vadd.f32 %v190, %v201
  %v215 = vadd.f32 %v191, %v206
  %v216 = vadd.f32 %v192, %v206
  %v217 = vadd.f32 %v193, %v211
  %v218 = vadd.f32 %v194, %v211
  %v219 = vmul.f32 %v213, 0.5
  %v220 = vmul.f32 %v214, 0.5
  %v221 = vmul.f32 %v215, 0.5
  %v222 = vmul.f32 %v216, 0.5
  %v223 = vmul.f32 %v217, 0.5
  %v224 = vmul.f32 %v218, 0.5
  %v225 = vrcp.pop 1.4142135
  %v226 = vmul.f32 %v213, %v225
  %v227 = vmul.f32 %v214, %v225
  %v228 = vmul.f32 %v215, %v225
  %v229 = vmul.f32 %v216, %v225
  %v230 = vmul.f32 %v217, %v225
  %v231 = vmul.f32 %v218, %v225
  %vm232 = vcmp.ge.f32.partialorder %v226, 0.0
  %vm233 = vcmp.ge.f32.partialorder %v227, 0.0
  %vm234 = vcmp.ge.f32.partialorder %v228, 0.0
  %vm235 = vcmp.ge.f32.partialorder %v229, 0.0
  %vm236 = vcmp.ge.f32.partialorder %v230, 0.0
  %vm237 = vcmp.ge.f32.partialorder %v231, 0.0
  %v238 = vsel %vm232, 1.0, -1.0
  %v239 = vsel %vm233, 1.0, -1.0
  %v240 = vsel %vm234, 1.0, -1.0
  %v241 = vsel %vm235, 1.0, -1.0
  %v242 = vsel %vm236, 1.0, -1.0
  %v243 = vsel %vm237, 1.0, -1.0
  %v244 = vand.u32 2147483647, %v226
  %v245 = vand.u32 2147483647, %v227
  %v246 = vand.u32 2147483647, %v228
  %v247 = vand.u32 2147483647, %v229
  %v248 = vand.u32 2147483647, %v230
  %v249 = vand.u32 2147483647, %v231
  %v250 = vmul.f32 %v244, 0.3275911
  %v251 = vmul.f32 %v245, 0.3275911
  %v252 = vmul.f32 %v246, 0.3275911
  %v253 = vmul.f32 %v247, 0.3275911
  %v254 = vmul.f32 %v248, 0.3275911
  %v255 = vmul.f32 %v249, 0.3275911
  %v256 = vadd.f32 %v250, 1.0
  %v257 = vadd.f32 %v251, 1.0
  %v258 = vadd.f32 %v252, 1.0
  %v259 = vadd.f32 %v253, 1.0
  %v260 = vadd.f32 %v254, 1.0
  %v261 = vadd.f32 %v255, 1.0
  %v262 = vrcp.pop %v256
  %v263 = vmul.f32 1.0, %v262
  %v264 = vrcp.pop %v257
  %v265 = vmul.f32 1.0, %v264
  %v266 = vrcp.pop %v258
  %v267 = vmul.f32 1.0, %v266
  %v268 = vrcp.pop %v259
  %v269 = vmul.f32 1.0, %v268
  %v270 = vrcp.pop %v260
  %v271 = vmul.f32 1.0, %v270
  %v272 = vrcp.pop %v261
  %v273 = vmul.f32 1.0, %v272
  %v274 = vmul.f32 %v263, 1.0614054
  %v275 = vmul.f32 %v265, 1.0614054
  %v276 = vmul.f32 %v267, 1.0614054
  %v277 = vmul.f32 %v269, 1.0614054
  %v278 = vmul.f32 %v271, 1.0614054
  %v279 = vmul.f32 %v273, 1.0614054
  %v280 = vadd.f32 %v274, -1.4531521
  %v281 = vadd.f32 %v275, -1.4531521
  %v282 = vadd.f32 %v276, -1.4531521
  %v283 = vadd.f32 %v277, -1.4531521
  %v284 = vadd.f32 %v278, -1.4531521
  %v285 = vadd.f32 %v279, -1.4531521
  %v286 = vmul.f32 %v280, %v263
  %v287 = vmul.f32 %v281, %v265
  %v288 = vmul.f32 %v282, %v267
  %v289 = vmul.f32 %v283, %v269
  %v290 = vmul.f32 %v284, %v271
  %v291 = vmul.f32 %v285, %v273
  %v292 = vadd.f32 %v286, 1.4214138
  %v293 = vadd.f32 %v287, 1.4214138
  %v294 = vadd.f32 %v288, 1.4214138
  %v295 = vadd.f32 %v289, 1.4214138
  %v296 = vadd.f32 %v290, 1.4214138
  %v297 = vadd.f32 %v291, 1.4214138
  %v298 = vmul.f32 %v292, %v263
  %v299 = vmul.f32 %v293, %v265
  %v300 = vmul.f32 %v294, %v267
  %v301 = vmul.f32 %v295, %v269
  %v302 = vmul.f32 %v296, %v271
  %v303 = vmul.f32 %v297, %v273
  %v304 = vadd.f32 %v298, -0.28449672
  %v305 = vadd.f32 %v299, -0.28449672
  %v306 = vadd.f32 %v300, -0.28449672
  %v307 = vadd.f32 %v301, -0.28449672
  %v308 = vadd.f32 %v302, -0.28449672
  %v309 = vadd.f32 %v303, -0.28449672
  %v310 = vmul.f32 %v304, %v263
  %v311 = vmul.f32 %v305, %v265
  %v312 = vmul.f32 %v306, %v267
  %v313 = vmul.f32 %v307, %v269
  %v314 = vmul.f32 %v308, %v271
  %v315 = vmul.f32 %v309, %v273
  %v316 = vadd.f32 %v310, 0.2548296
  %v317 = vadd.f32 %v311, 0.2548296
  %v318 = vadd.f32 %v312, 0.2548296
  %v319 = vadd.f32 %v313, 0.2548296
  %v320 = vadd.f32 %v314, 0.2548296
  %v321 = vadd.f32 %v315, 0.2548296
  %v322 = vmul.f32 %v316, %v263
  %v323 = vmul.f32 %v317, %v265
  %v324 = vmul.f32 %v318, %v267
  %v325 = vmul.f32 %v319, %v269
  %v326 = vmul.f32 %v320, %v271
  %v327 = vmul.f32 %v321, %v273
  %v328 = vsub.f32 0.0, %v244
  %v329 = vsub.f32 0.0, %v245
  %v330 = vsub.f32 0.0, %v246
  %v331 = vsub.f32 0.0, %v247
  %v332 = vsub.f32 0.0, %v248
  %v333 = vsub.f32 0.0, %v249
  %v334 = vmul.f32 %v328, %v244
  %v335 = vmul.f32 %v329, %v245
  %v336 = vmul.f32 %v330, %v246
  %v337 = vmul.f32 %v331, %v247
  %v338 = vmul.f32 %v332, %v248
  %v339 = vmul.f32 %v333, %v249
  %v340 = vmul.f32 %v334, 1.442695
  %v341 = vpow.pop %v340
  %v342 = vmul.f32 %v335, 1.442695
  %v343 = vpow.pop %v342
  %v344 = vmul.f32 %v336, 1.442695
  %v345 = vpow.pop %v344
  %v346 = vmul.f32 %v337, 1.442695
  %v347 = vpow.pop %v346
  %v348 = vmul.f32 %v338, 1.442695
  %v349 = vpow.pop %v348
  %v350 = vmul.f32 %v339, 1.442695
  %v351 = vpow.pop %v350
  %v352 = vmul.f32 %v322, %v341
  %v353 = vmul.f32 %v323, %v343
  %v354 = vmul.f32 %v324, %v345
  %v355 = vmul.f32 %v325, %v347
  %v356 = vmul.f32 %v326, %v349
  %v357 = vmul.f32 %v327, %v351
  %v358 = vsub.f32 1.0, %v352
  %v359 = vsub.f32 1.0, %v353
  %v360 = vsub.f32 1.0, %v354
  %v361 = vsub.f32 1.0, %v355
  %v362 = vsub.f32 1.0, %v356
  %v363 = vsub.f32 1.0, %v357
  %v364 = vmul.f32 %v238, %v358
  %v365 = vmul.f32 %v239, %v359
  %v366 = vmul.f32 %v240, %v360
  %v367 = vmul.f32 %v241, %v361
  %v368 = vmul.f32 %v242, %v362
  %v369 = vmul.f32 %v243, %v363
  %v370 = vadd.f32 %v364, 1.0
  %v371 = vadd.f32 %v365, 1.0
  %v372 = vadd.f32 %v366, 1.0
  %v373 = vadd.f32 %v367, 1.0
  %v374 = vadd.f32 %v368, 1.0
  %v375 = vadd.f32 %v369, 1.0
  %v376 = vmul.f32 %v219, %v370
  %v377 = vmul.f32 %v220, %v371
  %v378 = vmul.f32 %v221, %v372
  %v379 = vmul.f32 %v222, %v373
  %v380 = vmul.f32 %v223, %v374
  %v381 = vmul.f32 %v224, %v375
  %v382 = vld [vmem:[%s4] sm:$0xff]
  %v383 = vld [vmem:[%s4 + $0x8] sm:$0xff]
  %v384 = vld [vmem:[%s4 + $0x10] sm:$0xff]
  %v385 = vld [vmem:[%s4 + $0x18] sm:$0xff]
  %v386 = vld [vmem:[%s4 + $0x20] sm:$0xff]
  %v387 = vld [vmem:[%s4 + $0x28] sm:$0xff]
  %v388 = vld [vmem:[%s4 + $0x30] sm:$0xff]
  %v389 = vld [vmem:[%s4 + $0x38] sm:$0xff]
  %v390 = vld [vmem:[%s4 + $0x40] sm:$0xff]
  %v391 = vld [vmem:[%s4 + $0x48] sm:$0xff]
  %v392 = vld [vmem:[%s4 + $0x50] sm:$0xff]
  %v393 = vld [vmem:[%s4 + $0x58] sm:$0xff]
  %v394 = vld [vmem:[%s4 + $0x60] sm:$0xff]
  %v395 = vld [vmem:[%s4 + $0x68] sm:$0xff]
  %v396 = vld [vmem:[%s4 + $0x70] sm:$0xff]
  %v397 = vld [vmem:[%s4 + $0x78] sm:$0xff]
  %v398 = vld [vmem:[%s4 + $0x80] sm:$0xff]
  %v399 = vld [vmem:[%s4 + $0x88] sm:$0xff]
  %v400 = vld [vmem:[%s4 + $0x90] sm:$0xff]
  %v401 = vld [vmem:[%s4 + $0x98] sm:$0xff]
  %v402 = vld [vmem:[%s4 + $0xa0] sm:$0xff]
  %v403 = vld [vmem:[%s4 + $0xa8] sm:$0xff]
  %vm404 = vcmask 392192
  %v406 = vsel %vm404, %v377, 0
  %v409 = vsel %vm404, %v379, 0
  %v412 = vsel %vm404, %v381, 0
  %414 = vmatprep.subr.mxu0 0.0
  %415 = vmatpush1.msra.mxu0 %v397
  %416 = vmatprep.subr.mxu0 0.0
  %417 = vmatpush1.msra.mxu0 %v396
  %418 = vmatprep.subr.mxu0 0.0
  %419 = vmatpush1.msra.mxu0 %v395
  %420 = vmatprep.subr.mxu0 0.0
  %421 = vmatpush1.msra.mxu0 %v394
  %422 = vmatprep.subr.mxu0 0.0
  %423 = vmatpush1.msra.mxu0 %v393
  %424 = vmatprep.subr.mxu0 0.0
  %425 = vmatpush1.msra.mxu0 %v392
  %426 = vmatprep.subr.mxu0 0.0
  %427 = vmatpush1.msra.mxu0 %v391
  %428 = vmatprep.subr.mxu0 0.0
  %429 = vmatpush1.msra.mxu0 %v390
  %430 = vmatprep.subr.mxu0 0.0
  %431 = vmatpush1.msra.mxu0 %v389
  %432 = vmatprep.subr.mxu0 0.0
  %433 = vmatpush1.msra.mxu0 %v388
  %434 = vmatprep.subr.mxu0 0.0
  %435 = vmatpush1.msra.mxu0 %v387
  %436 = vmatprep.subr.mxu0 0.0
  %437 = vmatpush1.msra.mxu0 %v386
  %438 = vmatprep.subr.mxu0 0.0
  %439 = vmatpush1.msra.mxu0 %v385
  %440 = vmatprep.subr.mxu0 0.0
  %441 = vmatpush1.msra.mxu0 %v384
  %442 = vmatprep.subr.mxu0 0.0
  %443 = vmatpush1.msra.mxu0 %v383
  %444 = vmatprep.subr.mxu0 0.0
  %445 = vmatpush1.msra.mxu0 %v382
  %446 = vmatprep.subr.mxu0 0.0
  %447 = vmatpush2.msra.mxu0 0.0
  %448 = vmatprep.subr.mxu0 0.0
  %449 = vmatpush2.msra.mxu0 0.0
  %450 = vmatprep.subr.mxu0 0.0
  %451 = vmatpush2.msra.mxu0 0.0
  %452 = vmatprep.subr.mxu0 0.0
  %453 = vmatpush2.msra.mxu0 0.0
  %454 = vmatprep.subr.mxu0 0.0
  %455 = vmatpush2.msra.mxu0 0.0
  %456 = vmatprep.subr.mxu0 0.0
  %457 = vmatpush2.msra.mxu0 0.0
  %458 = vmatprep.subr.mxu0 0.0
  %459 = vmatpush2.msra.mxu0 0.0
  %460 = vmatprep.subr.mxu0 0.0
  %461 = vmatpush2.msra.mxu0 0.0
  %462 = vmatprep.subr.mxu0 0.0
  %463 = vmatpush2.msra.mxu0 0.0
  %464 = vmatprep.subr.mxu0 0.0
  %465 = vmatpush2.msra.mxu0 0.0
  %466 = vmatprep.subr.mxu0 0.0
  %467 = vmatpush2.msra.mxu0 %v403
  %468 = vmatprep.subr.mxu0 0.0
  %469 = vmatpush2.msra.mxu0 %v402
  %470 = vmatprep.subr.mxu0 0.0
  %471 = vmatpush2.msra.mxu0 %v401
  %472 = vmatprep.subr.mxu0 0.0
  %473 = vmatpush2.msra.mxu0 %v400
  %474 = vmatprep.subr.mxu0 0.0
  %475 = vmatpush2.msra.mxu0 %v399
  %476 = vmatprep.subr.mxu0 0.0
  %477 = vmatpush2.msra.mxu0 %v398
  %478 = vmatprep.mubr.f32.mxu0 %v406
  %479 = vmatmul.mubr.f32.gmra.mxu0 %v376
  %v480 = vpop.f32.mrf.mxu0
  %v481 = vadd.f32 0.0, %v480
  %v482 = vpop.f32.mrf.mxu0
  %483 = vmatprep.mubr.f32.mxu0 %v409
  %484 = vmatmul.mubr.f32.gmra.mxu0 %v378
  %v485 = vpop.f32.mrf.mxu0
  %v486 = vadd.f32 0.0, %v485
  %v487 = vpop.f32.mrf.mxu0
  %488 = vmatprep.mubr.f32.mxu0 %v412
  %489 = vmatmul.mubr.f32.gmra.mxu0 %v380
  %v490 = vpop.f32.mrf.mxu0
  %v491 = vadd.f32 0.0, %v490
  %v492 = vpop.f32.mrf.mxu0
  %493 = vdwg.mxu0
  %v494 = vld [vmem:[%s5] sm:$0xff]
  %v495 = vld [vmem:[%s5 + $0x8] sm:$0xff]
  %v496 = vld [vmem:[%s5 + $0x10] sm:$0xff]
  %v497 = vld [vmem:[#allocation2] sm:$0x1]
  %v499 = vlaneseq
  %v500 = vshrl.u32 %v499, 7
  %v501 = vsub.s32 0, %v500
  %v502 = vrot.slane %v497, %v501
  %503 = vset.pattern.permute.xlu0 0
  %504 = vperm.xlu0 %503, %v502
  %v505 = vpop.permute.xlu0 %504
  %vm507 = vcmask 195584
  %v509 = vsel %vm507, %v494, 0
  %v512 = vsel %vm507, %v495, 0
  %v515 = vsel %vm507, %v496, 0
  %517 = vmatprep.subr.mxu0 0.0
  %518 = vmatpush1.msra.mxu0 0.0
  %519 = vmatprep.subr.mxu0 0.0
  %520 = vmatpush1.msra.mxu0 0.0
  %521 = vmatprep.subr.mxu0 0.0
  %522 = vmatpush1.msra.mxu0 0.0
  %523 = vmatprep.subr.mxu0 0.0
  %524 = vmatpush1.msra.mxu0 0.0
  %525 = vmatprep.subr.mxu0 0.0
  %526 = vmatpush1.msra.mxu0 0.0
  %527 = vmatprep.subr.mxu0 0.0
  %528 = vmatpush1.msra.mxu0 0.0
  %529 = vmatprep.subr.mxu0 0.0
  %530 = vmatpush1.msra.mxu0 0.0
  %531 = vmatprep.subr.mxu0 0.0
  %532 = vmatpush1.msra.mxu0 0.0
  %533 = vmatprep.subr.mxu0 0.0
  %534 = vmatpush1.msra.mxu0 0.0
  %535 = vmatprep.subr.mxu0 0.0
  %536 = vmatpush1.msra.mxu0 0.0
  %537 = vmatprep.subr.mxu0 0.0
  %538 = vmatpush1.msra.mxu0 0.0
  %539 = vmatprep.subr.mxu0 0.0
  %540 = vmatpush1.msra.mxu0 0.0
  %541 = vmatprep.subr.mxu0 0.0
  %542 = vmatpush1.msra.mxu0 0.0
  %543 = vmatprep.subr.mxu0 0.0
  %544 = vmatpush1.msra.mxu0 %v491
  %545 = vmatprep.subr.mxu0 0.0
  %546 = vmatpush1.msra.mxu0 %v486
  %547 = vmatprep.subr.mxu0 0.0
  %548 = vmatpush1.msra.mxu0 %v481
  %549 = vmatprep.subr.mxu0 0.0
  %550 = vmatpush2.msra.mxu0 0.0
  %551 = vmatprep.subr.mxu0 0.0
  %552 = vmatpush2.msra.mxu0 0.0
  %553 = vmatprep.subr.mxu0 0.0
  %554 = vmatpush2.msra.mxu0 0.0
  %555 = vmatprep.subr.mxu0 0.0
  %556 = vmatpush2.msra.mxu0 0.0
  %557 = vmatprep.subr.mxu0 0.0
  %558 = vmatpush2.msra.mxu0 0.0
  %559 = vmatprep.subr.mxu0 0.0
  %560 = vmatpush2.msra.mxu0 0.0
  %561 = vmatprep.subr.mxu0 0.0
  %562 = vmatpush2.msra.mxu0 0.0
  %563 = vmatprep.subr.mxu0 0.0
  %564 = vmatpush2.msra.mxu0 0.0
  %565 = vmatprep.subr.mxu0 0.0
  %566 = vmatpush2.msra.mxu0 0.0
  %567 = vmatprep.subr.mxu0 0.0
  %568 = vmatpush2.msra.mxu0 0.0
  %569 = vmatprep.subr.mxu0 0.0
  %570 = vmatpush2.msra.mxu0 0.0
  %571 = vmatprep.subr.mxu0 0.0
  %572 = vmatpush2.msra.mxu0 0.0
  %573 = vmatprep.subr.mxu0 0.0
  %574 = vmatpush2.msra.mxu0 0.0
  %575 = vmatprep.subr.mxu0 0.0
  %576 = vmatpush2.msra.mxu0 0.0
  %577 = vmatprep.subr.mxu0 0.0
  %578 = vmatpush2.msra.mxu0 0.0
  %579 = vmatprep.subr.mxu0 0.0
  %580 = vmatpush2.msra.mxu0 0.0
  %581 = vmatprep.mubr.f32.mxu0 0.0
  %582 = vmatmul.mubr.f32.gmra.mxu0 %v509
  %v583 = vpop.f32.mrf.mxu0
  %v584 = vadd.f32 %v505, %v583
  %v585 = vpop.f32.mrf.mxu0
  %586 = vmatprep.mubr.f32.mxu0 0.0
  %587 = vmatmul.mubr.f32.gmra.mxu0 %v512
  %v588 = vpop.f32.mrf.mxu0
  %v589 = vadd.f32 %v505, %v588
  %v590 = vpop.f32.mrf.mxu0
  %591 = vmatprep.mubr.f32.mxu0 0.0
  %592 = vmatmul.mubr.f32.gmra.mxu0 %v515
  %v593 = vpop.f32.mrf.mxu0
  %v594 = vadd.f32 %v505, %v593
  %v595 = vpop.f32.mrf.mxu0
  %596 = vdwg.mxu0
  %vm597 = vcmask 179200
  %v598 = vsel %vm597, %v584, -inf
  %v599 = vsel %vm597, %v589, -inf
  %v600 = vsel %vm597, %v594, -inf
  %v601 = vmax.f32 %v598, %v599
  %v602 = vmax.f32 %v601, %v600
  %v603 = vrot.slane %v602, 4
  %v604 = vmax.f32 %v602, %v603
  %v605 = vrot.slane %v604, 2
  %v606 = vmax.f32 %v604, %v605
  %v607 = vrot.slane %v606, 1
  %v608 = vmax.f32 %v606, %v607
  %v609 = vsub.f32 %v584, %v608
  %v610 = vsub.f32 %v589, %v608
  %v611 = vsub.f32 %v594, %v608
  %v612 = vmul.f32 %v609, 1.442695
  %v613 = vpow.pop %v612
  %v614 = vmul.f32 %v610, 1.442695
  %v615 = vpow.pop %v614
  %v616 = vmul.f32 %v611, 1.442695
  %v617 = vpow.pop %v616
  %v618 = vsel %vm597, %v613, 0.0
  %v619 = vsel %vm597, %v615, 0.0
  %v620 = vadd.f32 %v618, %v619
  %v621 = vsel %vm597, %v617, 0.0
  %v622 = vadd.f32 %v620, %v621
  %v623 = vrot.slane %v622, 4
  %v624 = vadd.f32 %v622, %v623
  %v625 = vrot.slane %v624, 2
  %v626 = vadd.f32 %v624, %v625
  %v627 = vrot.slane %v626, 1
  %v628 = vadd.f32 %v626, %v627
  %v629 = vrcp.pop %v628
  %v630 = vmul.f32 %v613, %v629
  %v631 = vmul.f32 %v615, %v629
  %v632 = vmul.f32 %v617, %v629
  %v633 = vld [vmem:[%s7] sm:$0xff]
  %v634 = vld [vmem:[%s7 + $0x8] sm:$0xff]
  %v635 = vld [vmem:[%s7 + $0x10] sm:$0xff]
  %v636 = vld [vmem:[%s7 + $0x18] sm:$0xff]
  %v637 = vld [vmem:[%s7 + $0x20] sm:$0x3f]
  %v638 = vld [vmem:[%s7 + $0x28] sm:$0x3f]
  %v640 = vsel %vm597, %v630, 0
  %v643 = vsel %vm597, %v631, 0
  %v646 = vsel %vm597, %v632, 0
  %vm648 = vcmask 1045504
  %v650 = vsel %vm648, %v637, 0
  %v653 = vsel %vm648, %v638, 0
  %655 = vmatprep.subr.mxu0 0.0
  %656 = vmatpush1.msra.mxu0 0.0
  %657 = vmatprep.subr.mxu0 0.0
  %658 = vmatpush1.msra.mxu0 0.0
  %659 = vmatprep.subr.mxu0 0.0
  %660 = vmatpush1.msra.mxu0 0.0
  %661 = vmatprep.subr.mxu0 0.0
  %662 = vmatpush1.msra.mxu0 0.0
  %663 = vmatprep.subr.mxu0 0.0
  %664 = vmatpush1.msra.mxu0 0.0
  %665 = vmatprep.subr.mxu0 0.0
  %666 = vmatpush1.msra.mxu0 0.0
  %667 = vmatprep.subr.mxu0 0.0
  %668 = vmatpush1.msra.mxu0 0.0
  %669 = vmatprep.subr.mxu0 0.0
  %670 = vmatpush1.msra.mxu0 0.0
  %671 = vmatprep.subr.mxu0 0.0
  %672 = vmatpush1.msra.mxu0 0.0
  %673 = vmatprep.subr.mxu0 0.0
  %674 = vmatpush1.msra.mxu0 0.0
  %675 = vmatprep.subr.mxu0 0.0
  %676 = vmatpush1.msra.mxu0 0.0
  %677 = vmatprep.subr.mxu0 0.0
  %678 = vmatpush1.msra.mxu0 0.0
  %679 = vmatprep.subr.mxu0 0.0
  %680 = vmatpush1.msra.mxu0 0.0
  %681 = vmatprep.subr.mxu0 %v653
  %682 = vmatpush1.msra.mxu0 %v650
  %683 = vmatprep.subr.mxu0 %v636
  %684 = vmatpush1.msra.mxu0 %v635
  %685 = vmatprep.subr.mxu0 %v634
  %686 = vmatpush1.msra.mxu0 %v633
  %687 = vmatprep.subr.mxu0 0.0
  %688 = vmatpush2.msra.mxu0 0.0
  %689 = vmatprep.subr.mxu0 0.0
  %690 = vmatpush2.msra.mxu0 0.0
  %691 = vmatprep.subr.mxu0 0.0
  %692 = vmatpush2.msra.mxu0 0.0
  %693 = vmatprep.subr.mxu0 0.0
  %694 = vmatpush2.msra.mxu0 0.0
  %695 = vmatprep.subr.mxu0 0.0
  %696 = vmatpush2.msra.mxu0 0.0
  %697 = vmatprep.subr.mxu0 0.0
  %698 = vmatpush2.msra.mxu0 0.0
  %699 = vmatprep.subr.mxu0 0.0
  %700 = vmatpush2.msra.mxu0 0.0
  %701 = vmatprep.subr.mxu0 0.0
  %702 = vmatpush2.msra.mxu0 0.0
  %703 = vmatprep.subr.mxu0 0.0
  %704 = vmatpush2.msra.mxu0 0.0
  %705 = vmatprep.subr.mxu0 0.0
  %706 = vmatpush2.msra.mxu0 0.0
  %707 = vmatprep.subr.mxu0 0.0
  %708 = vmatpush2.msra.mxu0 0.0
  %709 = vmatprep.subr.mxu0 0.0
  %710 = vmatpush2.msra.mxu0 0.0
  %711 = vmatprep.subr.mxu0 0.0
  %712 = vmatpush2.msra.mxu0 0.0
  %713 = vmatprep.subr.mxu0 0.0
  %714 = vmatpush2.msra.mxu0 0.0
  %715 = vmatprep.subr.mxu0 0.0
  %716 = vmatpush2.msra.mxu0 0.0
  %717 = vmatprep.subr.mxu0 0.0
  %718 = vmatpush2.msra.mxu0 0.0
  %719 = vmatprep.mubr.f32.mxu0 0.0
  %720 = vmatmul.mubr.f32.gmra.mxu0 %v640
  %v721 = vpop.f32.mrf.mxu0
  %v722 = vadd.f32 0.0, %v721
  %v723 = vpop.f32.mrf.mxu0
  %v724 = vadd.f32 0.0, %v723
  %725 = vmatprep.mubr.f32.mxu0 0.0
  %726 = vmatmul.mubr.f32.gmra.mxu0 %v643
  %v727 = vpop.f32.mrf.mxu0
  %v728 = vadd.f32 0.0, %v727
  %v729 = vpop.f32.mrf.mxu0
  %v730 = vadd.f32 0.0, %v729
  %731 = vmatprep.mubr.f32.mxu0 0.0
  %732 = vmatmul.mubr.f32.gmra.mxu0 %v646
  %v733 = vpop.f32.mrf.mxu0
  %v734 = vadd.f32 0.0, %v733
  %v735 = vpop.f32.mrf.mxu0
  %v736 = vadd.f32 0.0, %v735
  %737 = vdwg.mxu0
  %v738 = vld [vmem:[%s8] sm:$0xff]
  %v739 = vld [vmem:[%s8 + $0x8] sm:$0x1]
  %v740 = vmul.f32 %v722, %v376
  %v741 = vmul.f32 %v724, %v377
  %v742 = vmul.f32 %v728, %v378
  %v743 = vmul.f32 %v730, %v379
  %v744 = vmul.f32 %v734, %v380
  %v745 = vmul.f32 %v736, %v381
  %v747 = vsel %vm507, %v738, 0
  %v750 = vsel %vm507, %v739, 0
  %752 = vmatprep.subr.mxu0 0.0
  %753 = vmatpush1.msra.mxu0 0.0
  %754 = vmatprep.subr.mxu0 0.0
  %755 = vmatpush1.msra.mxu0 0.0
  %756 = vmatprep.subr.mxu0 0.0
  %757 = vmatpush1.msra.mxu0 0.0
  %758 = vmatprep.subr.mxu0 0.0
  %759 = vmatpush1.msra.mxu0 0.0
  %760 = vmatprep.subr.mxu0 0.0
  %761 = vmatpush1.msra.mxu0 0.0
  %762 = vmatprep.subr.mxu0 0.0
  %763 = vmatpush1.msra.mxu0 0.0
  %764 = vmatprep.subr.mxu0 0.0
  %765 = vmatpush1.msra.mxu0 0.0
  %766 = vmatprep.subr.mxu0 0.0
  %767 = vmatpush1.msra.mxu0 0.0
  %768 = vmatprep.subr.mxu0 0.0
  %769 = vmatpush1.msra.mxu0 0.0
  %770 = vmatprep.subr.mxu0 0.0
  %771 = vmatpush1.msra.mxu0 0.0
  %772 = vmatprep.subr.mxu0 0.0
  %773 = vmatpush1.msra.mxu0 0.0
  %774 = vmatprep.subr.mxu0 0.0
  %775 = vmatpush1.msra.mxu0 0.0
  %776 = vmatprep.subr.mxu0 0.0
  %777 = vmatpush1.msra.mxu0 0.0
  %778 = vmatprep.subr.mxu0 %v745
  %779 = vmatpush1.msra.mxu0 %v744
  %780 = vmatprep.subr.mxu0 %v743
  %781 = vmatpush1.msra.mxu0 %v742
  %782 = vmatprep.subr.mxu0 %v741
  %783 = vmatpush1.msra.mxu0 %v740
  %784 = vmatprep.subr.mxu0 0.0
  %785 = vmatpush2.msra.mxu0 0.0
  %786 = vmatprep.subr.mxu0 0.0
  %787 = vmatpush2.msra.mxu0 0.0
  %788 = vmatprep.subr.mxu0 0.0
  %789 = vmatpush2.msra.mxu0 0.0
  %790 = vmatprep.subr.mxu0 0.0
  %791 = vmatpush2.msra.mxu0 0.0
  %792 = vmatprep.subr.mxu0 0.0
  %793 = vmatpush2.msra.mxu0 0.0
  %794 = vmatprep.subr.mxu0 0.0
  %795 = vmatpush2.msra.mxu0 0.0
  %796 = vmatprep.subr.mxu0 0.0
  %797 = vmatpush2.msra.mxu0 0.0
  %798 = vmatprep.subr.mxu0 0.0
  %799 = vmatpush2.msra.mxu0 0.0
  %800 = vmatprep.subr.mxu0 0.0
  %801 = vmatpush2.msra.mxu0 0.0
  %802 = vmatprep.subr.mxu0 0.0
  %803 = vmatpush2.msra.mxu0 0.0
  %804 = vmatprep.subr.mxu0 0.0
  %805 = vmatpush2.msra.mxu0 0.0
  %806 = vmatprep.subr.mxu0 0.0
  %807 = vmatpush2.msra.mxu0 0.0
  %808 = vmatprep.subr.mxu0 0.0
  %809 = vmatpush2.msra.mxu0 0.0
  %810 = vmatprep.subr.mxu0 0.0
  %811 = vmatpush2.msra.mxu0 0.0
  %812 = vmatprep.subr.mxu0 0.0
  %813 = vmatpush2.msra.mxu0 0.0
  %814 = vmatprep.subr.mxu0 0.0
  %815 = vmatpush2.msra.mxu0 0.0
  %816 = vmatprep.mubr.f32.mxu0 0.0
  %817 = vmatmul.mubr.f32.gmra.mxu0 %v747
  %v818 = vpop.f32.mrf.mxu0
  %v819 = vadd.f32 0.0, %v818
  %v820 = vpop.f32.mrf.mxu0
  %v821 = vadd.f32 0.0, %v820
  %822 = vmatprep.mubr.f32.mxu0 0.0
  %823 = vmatmul.mubr.f32.gmra.mxu0 %v750
  %v824 = vpop.f32.mrf.mxu0
  %v825 = vadd.f32 0.0, %v824
  %v826 = vpop.f32.mrf.mxu0
  %v827 = vadd.f32 0.0, %v826
  %828 = vdwg.mxu0
  %v829 = vld [vmem:[%s9] sm:$0xff]
  %v830 = vld [vmem:[%s9 + $0x8] sm:$0xff]
  %v831 = vld [vmem:[%s9 + $0x10] sm:$0x1]
  %v832 = vld [vmem:[%s9 + $0x18] sm:$0x1]
  %v833 = vmul.f32 %v829, %v819
  %v834 = vmul.f32 %v830, %v821
  %v835 = vmul.f32 %v831, %v825
  %v836 = vmul.f32 %v832, %v827
  %v838 = vsel %vm404, %v834, 0
  %v841 = vsel %vm404, %v836, 0
  %843 = vmatprep.subr.mxu0 0.0
  %844 = vmatpush1.msra.mxu0 %v397
  %845 = vmatprep.subr.mxu0 0.0
  %846 = vmatpush1.msra.mxu0 %v396
  %847 = vmatprep.subr.mxu0 0.0
  %848 = vmatpush1.msra.mxu0 %v395
  %849 = vmatprep.subr.mxu0 0.0
  %850 = vmatpush1.msra.mxu0 %v394
  %851 = vmatprep.subr.mxu0 0.0
  %852 = vmatpush1.msra.mxu0 %v393
  %853 = vmatprep.subr.mxu0 0.0
  %854 = vmatpush1.msra.mxu0 %v392
  %855 = vmatprep.subr.mxu0 0.0
  %856 = vmatpush1.msra.mxu0 %v391
  %857 = vmatprep.subr.mxu0 0.0
  %858 = vmatpush1.msra.mxu0 %v390
  %859 = vmatprep.subr.mxu0 0.0
  %860 = vmatpush1.msra.mxu0 %v389
  %861 = vmatprep.subr.mxu0 0.0
  %862 = vmatpush1.msra.mxu0 %v388
  %863 = vmatprep.subr.mxu0 0.0
  %864 = vmatpush1.msra.mxu0 %v387
  %865 = vmatprep.subr.mxu0 0.0
  %866 = vmatpush1.msra.mxu0 %v386
  %867 = vmatprep.subr.mxu0 0.0
  %868 = vmatpush1.msra.mxu0 %v385
  %869 = vmatprep.subr.mxu0 0.0
  %870 = vmatpush1.msra.mxu0 %v384
  %871 = vmatprep.subr.mxu0 0.0
  %872 = vmatpush1.msra.mxu0 %v383
  %873 = vmatprep.subr.mxu0 0.0
  %874 = vmatpush1.msra.mxu0 %v382
  %875 = vmatprep.subr.mxu0 0.0
  %876 = vmatpush2.msra.mxu0 0.0
  %877 = vmatprep.subr.mxu0 0.0
  %878 = vmatpush2.msra.mxu0 0.0
  %879 = vmatprep.subr.mxu0 0.0
  %880 = vmatpush2.msra.mxu0 0.0
  %881 = vmatprep.subr.mxu0 0.0
  %882 = vmatpush2.msra.mxu0 0.0
  %883 = vmatprep.subr.mxu0 0.0
  %884 = vmatpush2.msra.mxu0 0.0
  %885 = vmatprep.subr.mxu0 0.0
  %886 = vmatpush2.msra.mxu0 0.0
  %887 = vmatprep.subr.mxu0 0.0
  %888 = vmatpush2.msra.mxu0 0.0
  %889 = vmatprep.subr.mxu0 0.0
  %890 = vmatpush2.msra.mxu0 0.0
  %891 = vmatprep.subr.mxu0 0.0
  %892 = vmatpush2.msra.mxu0 0.0
  %893 = vmatprep.subr.mxu0 0.0
  %894 = vmatpush2.msra.mxu0 0.0
  %895 = vmatprep.subr.mxu0 0.0
  %896 = vmatpush2.msra.mxu0 %v403
  %897 = vmatprep.subr.mxu0 0.0
  %898 = vmatpush2.msra.mxu0 %v402
  %899 = vmatprep.subr.mxu0 0.0
  %900 = vmatpush2.msra.mxu0 %v401
  %901 = vmatprep.subr.mxu0 0.0
  %902 = vmatpush2.msra.mxu0 %v400
  %903 = vmatprep.subr.mxu0 0.0
  %904 = vmatpush2.msra.mxu0 %v399
  %905 = vmatprep.subr.mxu0 0.0
  %906 = vmatpush2.msra.mxu0 %v398
  %907 = vmatprep.mubr.f32.mxu0 %v838
  %908 = vmatmul.mubr.f32.gmra.mxu0 %v833
  %v909 = vpop.f32.mrf.mxu0
  %v910 = vadd.f32 0.0, %v909
  %v911 = vpop.f32.mrf.mxu0
  %912 = vmatprep.mubr.f32.mxu0 %v841
  %913 = vmatmul.mubr.f32.gmra.mxu0 %v835
  %v914 = vpop.f32.mrf.mxu0
  %v915 = vadd.f32 0.0, %v914
  %v916 = vpop.f32.mrf.mxu0
  %917 = vdwg.mxu0
  %v918 = vld [vmem:[%s10] sm:$0xff]
  %v919 = vld [vmem:[%s10 + $0x8] sm:$0x1]
  %921 = vset.pattern.permute.xlu0 0
  %922 = vperm.xlu0 %921, %v918
  %v923 = vpop.permute.xlu0 %922
  %926 = vset.pattern.permute.xlu0 0
  %927 = vperm.xlu0 %926, %v919
  %v928 = vpop.permute.xlu0 %927
  %v930 = vmul.f32 %v923, %v910
  %v931 = vmul.f32 %v928, %v915
  %v932 = vld [vmem:[%s11] sm:$0xff]
  %v933 = vld [vmem:[%s11 + $0x8] sm:$0x1]
  %935 = vset.pattern.permute.xlu0 0
  %936 = vperm.xlu0 %935, %v932
  %v937 = vpop.permute.xlu0 %936
  %940 = vset.pattern.permute.xlu0 0
  %941 = vperm.xlu0 %940, %v933
  %v942 = vpop.permute.xlu0 %941
  %v944 = vadd.f32 %v930, %v937
  %v945 = vadd.f32 %v931, %v942
  %v946 = vmul.f32 %v944, 0.5
  %v947 = vmul.f32 %v945, 0.5
  %v948 = vmul.f32 %v944, %v225
  %v949 = vmul.f32 %v945, %v225
  %vm950 = vcmp.ge.f32.partialorder %v948, 0.0
  %vm951 = vcmp.ge.f32.partialorder %v949, 0.0
  %v952 = vsel %vm950, 1.0, -1.0
  %v953 = vsel %vm951, 1.0, -1.0
  %v954 = vand.u32 2147483647, %v948
  %v955 = vand.u32 2147483647, %v949
  %v956 = vmul.f32 %v954, 0.3275911
  %v957 = vmul.f32 %v955, 0.3275911
  %v958 = vadd.f32 %v956, 1.0
  %v959 = vadd.f32 %v957, 1.0
  %v960 = vrcp.pop %v958
  %v961 = vmul.f32 1.0, %v960
  %v962 = vrcp.pop %v959
  %v963 = vmul.f32 1.0, %v962
  %v964 = vmul.f32 %v961, 1.0614054
  %v965 = vmul.f32 %v963, 1.0614054
  %v966 = vadd.f32 %v964, -1.4531521
  %v967 = vadd.f32 %v965, -1.4531521
  %v968 = vmul.f32 %v966, %v961
  %v969 = vmul.f32 %v967, %v963
  %v970 = vadd.f32 %v968, 1.4214138
  %v971 = vadd.f32 %v969, 1.4214138
  %v972 = vmul.f32 %v970, %v961
  %v973 = vmul.f32 %v971, %v963
  %v974 = vadd.f32 %v972, -0.28449672
  %v975 = vadd.f32 %v973, -0.28449672
  %v976 = vmul.f32 %v974, %v961
  %v977 = vmul.f32 %v975, %v963
  %v978 = vadd.f32 %v976, 0.2548296
  %v979 = vadd.f32 %v977, 0.2548296
  %v980 = vmul.f32 %v978, %v961
  %v981 = vmul.f32 %v979, %v963
  %v982 = vsub.f32 0.0, %v954
  %v983 = vsub.f32 0.0, %v955
  %v984 = vmul.f32 %v982, %v954
  %v985 = vmul.f32 %v983, %v955
  %v986 = vmul.f32 %v984, 1.442695
  %v987 = vpow.pop %v986
  %v988 = vmul.f32 %v985, 1.442695
  %v989 = vpow.pop %v988
  %v990 = vmul.f32 %v980, %v987
  %v991 = vmul.f32 %v981, %v989
  %v992 = vsub.f32 1.0, %v990
  %v993 = vsub.f32 1.0, %v991
  %v994 = vmul.f32 %v952, %v992
  %v995 = vmul.f32 %v953, %v993
  %v996 = vadd.f32 %v994, 1.0
  %v997 = vadd.f32 %v995, 1.0
  %v998 = vmul.f32 %v946, %v996
  %v999 = vmul.f32 %v947, %v997
  %v1000 = vld [vmem:[%s12] sm:$0xff]
  %v1001 = vld [vmem:[%s12 + $0x8] sm:$0xff]
  %v1002 = vld [vmem:[%s12 + $0x10] sm:$0x3f]
  %v1004 = vsel %vm597, %v998, 0
  %v1007 = vsel %vm597, %v999, 0
  %v1010 = vsel %vm648, %v1002, 0
  %1012 = vmatprep.subr.mxu0 0.0
  %1013 = vmatpush1.msra.mxu0 0.0
  %1014 = vmatprep.subr.mxu0 0.0
  %1015 = vmatpush1.msra.mxu0 0.0
  %1016 = vmatprep.subr.mxu0 0.0
  %1017 = vmatpush1.msra.mxu0 0.0
  %1018 = vmatprep.subr.mxu0 0.0
  %1019 = vmatpush1.msra.mxu0 0.0
  %1020 = vmatprep.subr.mxu0 0.0
  %1021 = vmatpush1.msra.mxu0 0.0
  %1022 = vmatprep.subr.mxu0 0.0
  %1023 = vmatpush1.msra.mxu0 0.0
  %1024 = vmatprep.subr.mxu0 0.0
  %1025 = vmatpush1.msra.mxu0 0.0
  %1026 = vmatprep.subr.mxu0 0.0
  %1027 = vmatpush1.msra.mxu0 0.0
  %1028 = vmatprep.subr.mxu0 0.0
  %1029 = vmatpush1.msra.mxu0 0.0
  %1030 = vmatprep.subr.mxu0 0.0
  %1031 = vmatpush1.msra.mxu0 0.0
  %1032 = vmatprep.subr.mxu0 0.0
  %1033 = vmatpush1.msra.mxu0 0.0
  %1034 = vmatprep.subr.mxu0 0.0
  %1035 = vmatpush1.msra.mxu0 0.0
  %1036 = vmatprep.subr.mxu0 0.0
  %1037 = vmatpush1.msra.mxu0 0.0
  %1038 = vmatprep.subr.mxu0 0.0
  %1039 = vmatpush1.msra.mxu0 %v1010
  %1040 = vmatprep.subr.mxu0 0.0
  %1041 = vmatpush1.msra.mxu0 %v1001
  %1042 = vmatprep.subr.mxu0 0.0
  %1043 = vmatpush1.msra.mxu0 %v1000
  %1044 = vmatprep.subr.mxu0 0.0
  %1045 = vmatpush2.msra.mxu0 0.0
  %1046 = vmatprep.subr.mxu0 0.0
  %1047 = vmatpush2.msra.mxu0 0.0
  %1048 = vmatprep.subr.mxu0 0.0
  %1049 = vmatpush2.msra.mxu0 0.0
  %1050 = vmatprep.subr.mxu0 0.0
  %1051 = vmatpush2.msra.mxu0 0.0
  %1052 = vmatprep.subr.mxu0 0.0
  %1053 = vmatpush2.msra.mxu0 0.0
  %1054 = vmatprep.subr.mxu0 0.0
  %1055 = vmatpush2.msra.mxu0 0.0
  %1056 = vmatprep.subr.mxu0 0.0
  %1057 = vmatpush2.msra.mxu0 0.0
  %1058 = vmatprep.subr.mxu0 0.0
  %1059 = vmatpush2.msra.mxu0 0.0
  %1060 = vmatprep.subr.mxu0 0.0
  %1061 = vmatpush2.msra.mxu0 0.0
  %1062 = vmatprep.subr.mxu0 0.0
  %1063 = vmatpush2.msra.mxu0 0.0
  %1064 = vmatprep.subr.mxu0 0.0
  %1065 = vmatpush2.msra.mxu0 0.0
  %1066 = vmatprep.subr.mxu0 0.0
  %1067 = vmatpush2.msra.mxu0 0.0
  %1068 = vmatprep.subr.mxu0 0.0
  %1069 = vmatpush2.msra.mxu0 0.0
  %1070 = vmatprep.subr.mxu0 0.0
  %1071 = vmatpush2.msra.mxu0 0.0
  %1072 = vmatprep.subr.mxu0 0.0
  %1073 = vmatpush2.msra.mxu0 0.0
  %1074 = vmatprep.subr.mxu0 0.0
  %1075 = vmatpush2.msra.mxu0 0.0
  %1076 = vmatprep.mubr.f32.mxu0 0.0
  %1077 = vmatmul.mubr.f32.gmra.mxu0 %v1004
  %v1078 = vpop.f32.mrf.mxu0
  %v1079 = vadd.f32 0.0, %v1078
  %v1080 = vpop.f32.mrf.mxu0
  %1081 = vmatprep.mubr.f32.mxu0 0.0
  %1082 = vmatmul.mubr.f32.gmra.mxu0 %v1007
  %v1083 = vpop.f32.mrf.mxu0
  %v1084 = vadd.f32 0.0, %v1083
  %v1085 = vpop.f32.mrf.mxu0
  %1086 = vdwg.mxu0
  %vm1087 = vcmask 31744
  %1088 = vst.msk [vmem:[%s18] sm:$0xff] %vm1087, %v1079
  %vm1089 = vcmask 24576
  %1090 = vst.msk [vmem:[%s18 + $0x8] sm:$0x1] %vm1089, %v1084
  %vm1093 = vcmask 1040384
  %v1094 = vrot.slane %v1079, 7
  %v1095 = vrot.slane %v1084, 7
  %v1096 = vsel %vm1093, %v1094, %v1095
  %vm1099 = vcmask 1041408
  %v1100 = vrot.slane %v1079, 6
  %v1101 = vrot.slane %v1084, 6
  %v1102 = vsel %vm1099, %v1100, %v1101
  %v1105 = vrot.slane %v1079, 5
  %v1106 = vrot.slane %v1084, 5
  %v1107 = vsel %vm93, %v1105, %v1106
  %v1110 = vsel %vm1093, %v1084, %v1094
  %v1111 = vsel %vm1099, %v1096, %v1100
  %v1112 = vsel %vm93, %v1102, %v1105
  %v1113 = vld [vmem:[%s13] sm:$0xff]
  %v1114 = vld [vmem:[%s13 + $0x8] sm:$0xff]
  %v1115 = vld [vmem:[%s13 + $0x10] sm:$0xff]
  %v1116 = vld [vmem:[%s13 + $0x18] sm:$0xff]
  %v1117 = vld [vmem:[%s13 + $0x20] sm:$0xf]
  %v1118 = vmul.f32 %v1113, %v1079
  %v1119 = vmul.f32 %v1114, %v1110
  %v1120 = vmul.f32 %v1115, %v1111
  %v1121 = vmul.f32 %v1116, %v1112
  %v1122 = vmul.f32 %v1117, %v1107
  %v1123 = vld [vmem:[%s14] sm:$0xf]
  %v1125 = vsel %vm1087, %v1118, 0
  %v1128 = vsel %vm1087, %v1119, 0
  %v1131 = vsel %vm1087, %v1120, 0
  %v1134 = vsel %vm1087, %v1121, 0
  %v1137 = vsel %vm1087, %v1122, 0
  %vm1139 = vcmask 1043456
  %v1141 = vsel %vm1139, %v1123, 0
  %1143 = vmatprep.subr.mxu0 0.0
  %1144 = vmatpush1.msra.mxu0 0.0
  %1145 = vmatprep.subr.mxu0 0.0
  %1146 = vmatpush1.msra.mxu0 0.0
  %1147 = vmatprep.subr.mxu0 0.0
  %1148 = vmatpush1.msra.mxu0 0.0
  %1149 = vmatprep.subr.mxu0 0.0
  %1150 = vmatpush1.msra.mxu0 0.0
  %1151 = vmatprep.subr.mxu0 0.0
  %1152 = vmatpush1.msra.mxu0 0.0
  %1153 = vmatprep.subr.mxu0 0.0
  %1154 = vmatpush1.msra.mxu0 0.0
  %1155 = vmatprep.subr.mxu0 0.0
  %1156 = vmatpush1.msra.mxu0 0.0
  %1157 = vmatprep.subr.mxu0 0.0
  %1158 = vmatpush1.msra.mxu0 0.0
  %1159 = vmatprep.subr.mxu0 0.0
  %1160 = vmatpush1.msra.mxu0 0.0
  %1161 = vmatprep.subr.mxu0 0.0
  %1162 = vmatpush1.msra.mxu0 0.0
  %1163 = vmatprep.subr.mxu0 0.0
  %1164 = vmatpush1.msra.mxu0 0.0
  %1165 = vmatprep.subr.mxu0 0.0
  %1166 = vmatpush1.msra.mxu0 0.0
  %1167 = vmatprep.subr.mxu0 0.0
  %1168 = vmatpush1.msra.mxu0 0.0
  %1169 = vmatprep.subr.mxu0 0.0
  %1170 = vmatpush1.msra.mxu0 0.0
  %1171 = vmatprep.subr.mxu0 0.0
  %1172 = vmatpush1.msra.mxu0 0.0
  %1173 = vmatprep.subr.mxu0 0.0
  %1174 = vmatpush1.msra.mxu0 %v1141
  %1175 = vmatprep.subr.mxu0 0.0
  %1176 = vmatpush2.msra.mxu0 0.0
  %1177 = vmatprep.subr.mxu0 0.0
  %1178 = vmatpush2.msra.mxu0 0.0
  %1179 = vmatprep.subr.mxu0 0.0
  %1180 = vmatpush2.msra.mxu0 0.0
  %1181 = vmatprep.subr.mxu0 0.0
  %1182 = vmatpush2.msra.mxu0 0.0
  %1183 = vmatprep.subr.mxu0 0.0
  %1184 = vmatpush2.msra.mxu0 0.0
  %1185 = vmatprep.subr.mxu0 0.0
  %1186 = vmatpush2.msra.mxu0 0.0
  %1187 = vmatprep.subr.mxu0 0.0
  %1188 = vmatpush2.msra.mxu0 0.0
  %1189 = vmatprep.subr.mxu0 0.0
  %1190 = vmatpush2.msra.mxu0 0.0
  %1191 = vmatprep.subr.mxu0 0.0
  %1192 = vmatpush2.msra.mxu0 0.0
  %1193 = vmatprep.subr.mxu0 0.0
  %1194 = vmatpush2.msra.mxu0 0.0
  %1195 = vmatprep.subr.mxu0 0.0
  %1196 = vmatpush2.msra.mxu0 0.0
  %1197 = vmatprep.subr.mxu0 0.0
  %1198 = vmatpush2.msra.mxu0 0.0
  %1199 = vmatprep.subr.mxu0 0.0
  %1200 = vmatpush2.msra.mxu0 0.0
  %1201 = vmatprep.subr.mxu0 0.0
  %1202 = vmatpush2.msra.mxu0 0.0
  %1203 = vmatprep.subr.mxu0 0.0
  %1204 = vmatpush2.msra.mxu0 0.0
  %1205 = vmatprep.subr.mxu0 0.0
  %1206 = vmatpush2.msra.mxu0 0.0
  %1207 = vmatprep.mubr.f32.mxu0 0.0
  %1208 = vmatmul.mubr.f32.gmra.mxu0 %v1125
  %v1209 = vpop.f32.mrf.mxu0
  %v1210 = vadd.f32 0.0, %v1209
  %v1211 = vpop.f32.mrf.mxu0
  %1212 = vmatprep.mubr.f32.mxu0 0.0
  %1213 = vmatmul.mubr.f32.gmra.mxu0 %v1128
  %v1214 = vpop.f32.mrf.mxu0
  %v1215 = vadd.f32 0.0, %v1214
  %v1216 = vpop.f32.mrf.mxu0
  %1217 = vmatprep.mubr.f32.mxu0 0.0
  %1218 = vmatmul.mubr.f32.gmra.mxu0 %v1131
  %v1219 = vpop.f32.mrf.mxu0
  %v1220 = vadd.f32 0.0, %v1219
  %v1221 = vpop.f32.mrf.mxu0
  %1222 = vmatprep.mubr.f32.mxu0 0.0
  %1223 = vmatmul.mubr.f32.gmra.mxu0 %v1134
  %v1224 = vpop.f32.mrf.mxu0
  %v1225 = vadd.f32 0.0, %v1224
  %v1226 = vpop.f32.mrf.mxu0
  %1227 = vmatprep.mubr.f32.mxu0 0.0
  %1228 = vmatmul.mubr.f32.gmra.mxu0 %v1137
  %v1229 = vpop.f32.mrf.mxu0
  %v1230 = vadd.f32 0.0, %v1229
  %v1231 = vpop.f32.mrf.mxu0
  %1232 = vdwg.mxu0
  %v1233 = vld [vmem:[%s15] sm:$0xf]
  %v1234 = vld [vmem:[%s16] sm:$0xf]
  %1236 = vset.pattern.permute.xlu0 0
  %1237 = vperm.xlu0 %1236, %v1234
  %v1238 = vpop.permute.xlu0 %1237
  %vm1240 = vcmask 293888
  %v1242 = vsel %vm1240, %v1233, 0
  %v1245 = vsel %vm1139, %v1230, 0
  %1247 = vmatprep.subr.mxu0 0.0
  %1248 = vmatpush1.msra.mxu0 0.0
  %1249 = vmatprep.subr.mxu0 0.0
  %1250 = vmatpush1.msra.mxu0 0.0
  %1251 = vmatprep.subr.mxu0 0.0
  %1252 = vmatpush1.msra.mxu0 0.0
  %1253 = vmatprep.subr.mxu0 0.0
  %1254 = vmatpush1.msra.mxu0 0.0
  %1255 = vmatprep.subr.mxu0 0.0
  %1256 = vmatpush1.msra.mxu0 0.0
  %1257 = vmatprep.subr.mxu0 0.0
  %1258 = vmatpush1.msra.mxu0 0.0
  %1259 = vmatprep.subr.mxu0 0.0
  %1260 = vmatpush1.msra.mxu0 0.0
  %1261 = vmatprep.subr.mxu0 0.0
  %1262 = vmatpush1.msra.mxu0 0.0
  %1263 = vmatprep.subr.mxu0 0.0
  %1264 = vmatpush1.msra.mxu0 0.0
  %1265 = vmatprep.subr.mxu0 0.0
  %1266 = vmatpush1.msra.mxu0 0.0
  %1267 = vmatprep.subr.mxu0 0.0
  %1268 = vmatpush1.msra.mxu0 0.0
  %1269 = vmatprep.subr.mxu0 0.0
  %1270 = vmatpush1.msra.mxu0 %v1245
  %1271 = vmatprep.subr.mxu0 0.0
  %1272 = vmatpush1.msra.mxu0 %v1225
  %1273 = vmatprep.subr.mxu0 0.0
  %1274 = vmatpush1.msra.mxu0 %v1220
  %1275 = vmatprep.subr.mxu0 0.0
  %1276 = vmatpush1.msra.mxu0 %v1215
  %1277 = vmatprep.subr.mxu0 0.0
  %1278 = vmatpush1.msra.mxu0 %v1210
  %1279 = vmatprep.subr.mxu0 0.0
  %1280 = vmatpush2.msra.mxu0 0.0
  %1281 = vmatprep.subr.mxu0 0.0
  %1282 = vmatpush2.msra.mxu0 0.0
  %1283 = vmatprep.subr.mxu0 0.0
  %1284 = vmatpush2.msra.mxu0 0.0
  %1285 = vmatprep.subr.mxu0 0.0
  %1286 = vmatpush2.msra.mxu0 0.0
  %1287 = vmatprep.subr.mxu0 0.0
  %1288 = vmatpush2.msra.mxu0 0.0
  %1289 = vmatprep.subr.mxu0 0.0
  %1290 = vmatpush2.msra.mxu0 0.0
  %1291 = vmatprep.subr.mxu0 0.0
  %1292 = vmatpush2.msra.mxu0 0.0
  %1293 = vmatprep.subr.mxu0 0.0
  %1294 = vmatpush2.msra.mxu0 0.0
  %1295 = vmatprep.subr.mxu0 0.0
  %1296 = vmatpush2.msra.mxu0 0.0
  %1297 = vmatprep.subr.mxu0 0.0
  %1298 = vmatpush2.msra.mxu0 0.0
  %1299 = vmatprep.subr.mxu0 0.0
  %1300 = vmatpush2.msra.mxu0 0.0
  %1301 = vmatprep.subr.mxu0 0.0
  %1302 = vmatpush2.msra.mxu0 0.0
  %1303 = vmatprep.subr.mxu0 0.0
  %1304 = vmatpush2.msra.mxu0 0.0
  %1305 = vmatprep.subr.mxu0 0.0
  %1306 = vmatpush2.msra.mxu0 0.0
  %1307 = vmatprep.subr.mxu0 0.0
  %1308 = vmatpush2.msra.mxu0 0.0
  %1309 = vmatprep.subr.mxu0 0.0
  %1310 = vmatpush2.msra.mxu0 0.0
  %1311 = vmatprep.mubr.f32.mxu0 0.0
  %1312 = vmatmul.mubr.f32.gmra.mxu0 %v1242
  %v1313 = vpop.f32.mrf.mxu0
  %v1314 = vadd.f32 %v1238, %v1313
  %v1315 = vpop.f32.mrf.mxu0
  %1316 = vdwg.mxu0
  %vm1317 = vcmask 11264
  %v1318 = vsel %vm1317, %v1314, -inf
  %v1319 = vrot.slane %v1318, 4
  %v1320 = vmax.f32 %v1318, %v1319
  %v1321 = vrot.slane %v1320, 2
  %v1322 = vmax.f32 %v1320, %v1321
  %v1323 = vrot.slane %v1322, 1
  %v1324 = vmax.f32 %v1322, %v1323
  %v1325 = vsub.f32 %v1314, %v1324
  %v1326 = vmul.f32 %v1325, 1.442695
  %v1327 = vpow.pop %v1326
  %v1328 = vsel %vm1317, %v1327, 0.0
  %v1329 = vrot.slane %v1328, 4
  %v1330 = vadd.f32 %v1328, %v1329
  %v1331 = vrot.slane %v1330, 2
  %v1332 = vadd.f32 %v1330, %v1331
  %v1333 = vrot.slane %v1332, 1
  %v1334 = vadd.f32 %v1332, %v1333
  %v1335 = vrcp.pop %v1334
  %v1336 = vmul.f32 %v1327, %v1335
  %1337 = vst.msk [vmem:[%s17] sm:$0xf] %vm1317, %v1336
  // Predicated region
  $region70: #{tpu_custom_call.1} parent=0 // pred_check
    _
  $region71: #{tpu_custom_call.1} parent=0 // pred_check_branch
    %1339 = sbr.rel (0) target = $region73
  $region72: #{tpu_custom_call.1} parent=0 // pred_region
    _
  $region73: #{tpu_custom_call.1} parent=0 // pred_fallthru
    _
  // Predicated region
  $region74: #{tpu_custom_call.1} parent=0 // pred_check
    _
  $region75: #{tpu_custom_call.1} parent=0 // pred_check_branch
    %1341 = sbr.rel (0) target = $region77
  $region76: #{tpu_custom_call.1} parent=0 // pred_region
    _
  $region77: #{tpu_custom_call.1} parent=0 // pred_fallthru
    _
  // Predicated region
  $region78: #{tpu_custom_call.1} parent=0 // pred_check
    _
  $region79: #{tpu_custom_call.1} parent=0 // pred_check_branch
    %1343 = sbr.rel (0) target = $region81
  $region80: #{tpu_custom_call.1} parent=0 // pred_region
    _
  $region81: #{tpu_custom_call.1} parent=0 // pred_fallthru
    _
  // Predicated region
  $region82: #{tpu_custom_call.1} parent=0 // pred_check
    _
  $region83: #{tpu_custom_call.1} parent=0 // pred_check_branch
    %1345 = sbr.rel (0) target = $region85
  $region84: #{tpu_custom_call.1} parent=0 // pred_region
    _
  $region85: #{tpu_custom_call.1} parent=0 // pred_fallthru
    _

</llo_original>
